<compile_context>
chip_gen: v6e
topology: v6e:2x2x1
jax: 0.10.0
libtpu: 0.0.40
codegen_flags: <defaults>
</compile_context>

<pallas_src>
import math
import functools

import jax
import jax.numpy as jnp
from jax import lax
from jax.experimental import pallas as pl
from jax.experimental.pallas import tpu as pltpu


def _mha_kernel(q_ref, c_ref, wqT_ref, wkvT_ref, woT_ref, o_ref, *,
                dim_hidden, num_heads):
    """One (batch, Lq-tile) grid step: projections + attention + out-proj on-chip."""
    D = dim_hidden
    H = num_heads
    dh = D // H

    x_q = q_ref[...]            # (TLq, D)  compute dtype
    x_c = c_ref[...]            # (Lk,  D)
    cdt = x_q.dtype             # MXU operand dtype (bf16 when inputs are bf16)

    # q / kv projections — full-width MXU matmuls, f32 accumulation.
    # (W_q^T already carries the 1/sqrt(D) softmax scale.)
    q = jnp.dot(x_q, wqT_ref[...], preferred_element_type=jnp.float32)     # (TLq, D)
    kv = jnp.dot(x_c, wkvT_ref[...], preferred_element_type=jnp.float32)   # (Lk, 2D)
    q = q.astype(cdt)
    kv = kv.astype(cdt)

    tlq = x_q.shape[0]
    out = jnp.zeros((tlq, D), jnp.float32)

    # Static per-head loop (static lane slices). The concat of head outputs is
    # eliminated by accumulating the output projection per head.
    for h in range(H):
        lo, hi = h * dh, (h + 1) * dh
        qh = q[:, lo:hi]                  # (TLq, dh)
        kh = kv[:, lo:hi]                 # (Lk,  dh)
        vh = kv[:, D + lo:D + hi]         # (Lk,  dh)

        # q . k^T with the transpose folded into the contraction (no XLU transpose).
        s = lax.dot_general(qh, kh, (((1,), (1,)), ((), ())),
                            preferred_element_type=jnp.float32)            # (TLq, Lk)
        s = s - jnp.max(s, axis=-1, keepdims=True)
        p = jnp.exp(s)
        p = p * pl.reciprocal(jnp.sum(p, axis=-1, keepdims=True), approx=True)

        eh = jnp.dot(p.astype(cdt), vh, preferred_element_type=jnp.float32)  # (TLq, dh)

        # out += e_h @ WoT[h*dh:(h+1)*dh, :]  — sublane slice of the weight,
        # replaces the lane-axis concatenate of head outputs.
        out = out + jnp.dot(eh.astype(cdt), woT_ref[lo:hi, :],
                            preferred_element_type=jnp.float32)              # (TLq, D)

    o_ref[...] = out.astype(o_ref.dtype)


def multi_head_attention(query, context, wq, wkv, wo, *, num_heads,
                         block_q=256, mxu_dtype=None):
    """query: (B, Lq, D), context: (B, Lk, D); weights in PyTorch (out, in) layout."""
    B, Lq, D = query.shape
    Bc, Lk, Dc = context.shape
    assert (B, D) == (Bc, Dc)
    assert wq.shape == (D, D) and wkv.shape == (2 * D, D) and wo.shape == (D, D)
    assert D % num_heads == 0

    scale = 1.0 / math.sqrt(D)                    # module uses 1/sqrt(dim_hidden)
    cdt = jnp.dtype(mxu_dtype) if mxu_dtype is not None else query.dtype

    # One-time XLA-side prep (outside the kernel): transpose to (in, out),
    # fold the softmax scale into W_q^T, pick the MXU operand dtype.
    wqT = (wq.T * scale).astype(cdt)
    wkvT = wkv.T.astype(cdt)
    woT = wo.T.astype(cdt)
    x_q = query.astype(cdt)
    x_c = context.astype(cdt)

    # Lq tiling: bounds VMEM, more pipeline steps, and a 2-D parallel grid so
    # both v7x TensorCores get work even when B is tiny.
    tlq = block_q if (Lq % block_q == 0) else Lq
    # TODO(synk): pad/mask ragged Lq tiles so non-multiple Lq can still be tiled.
    n_q = Lq // tlq

    # Per-step VMEM footprint estimate: double-buffered blocks + f32 temporaries.
    isz = jnp.dtype(cdt).itemsize
    osz = jnp.dtype(query.dtype).itemsize
    blocks = tlq * D * isz + Lk * D * isz + 4 * D * D * isz + tlq * D * osz
    temps = 4 * (3 * tlq * D + 2 * Lk * D + tlq * Lk)
    vmem_limit = int(min(max(2 * blocks + temps + (4 << 20), 16 << 20), 64 << 20))

    kernel = functools.partial(_mha_kernel, dim_hidden=D, num_heads=num_heads)

    return pl.pallas_call(
        kernel,
        out_shape=jax.ShapeDtypeStruct((B, Lq, D), query.dtype),
        grid_spec=pltpu.PrefetchScalarGridSpec(
            num_scalar_prefetch=0,
            grid=(B, n_q),
            in_specs=[
                pl.BlockSpec((pl.Squeezed(), tlq, D), lambda b, i: (b, i, 0)),  # query tile
                pl.BlockSpec((pl.Squeezed(), Lk, D), lambda b, i: (b, 0, 0)),   # context
                pl.BlockSpec((D, D), lambda b, i: (0, 0)),                      # W_q^T (pre-scaled)
                pl.BlockSpec((D, 2 * D), lambda b, i: (0, 0)),                  # W_kv^T
                pl.BlockSpec((D, D), lambda b, i: (0, 0)),                      # W_out^T
            ],
            out_specs=pl.BlockSpec((pl.Squeezed(), tlq, D), lambda b, i: (b, i, 0)),
        ),
        compiler_params=pltpu.CompilerParams(
            dimension_semantics=("parallel", "parallel"),
            vmem_limit_bytes=vmem_limit),
    )(x_q, x_c, wqT, wkvT, woT)


def _reference(query, context, wq, wkv, wo, *, num_heads):
    """Pure-JAX reference mirroring the PyTorch forward (eval, mask=None)."""
    B, Lq, D = query.shape
    dh = D // num_heads
    scale = 1.0 / math.sqrt(D)
    q = query @ wq.T
    kv = context @ wkv.T
    k, v = kv[..., :D], kv[..., D:]
    q = q.reshape(B, Lq, num_heads, dh).transpose(0, 2, 1, 3)
    k = k.reshape(B, -1, num_heads, dh).transpose(0, 2, 1, 3)
    v = v.reshape(B, -1, num_heads, dh).transpose(0, 2, 1, 3)
    s = jnp.einsum('bhqa,bhka->bhqk', q, k) * scale
    w = jax.nn.softmax(s, axis=-1)
    e = jnp.einsum('bhqk,bhka->bhqa', w, v)
    e = e.transpose(0, 2, 1, 3).reshape(B, Lq, D)
    return e @ wo.T


if __name__ == "__main__":
    B, Lq, Lk, D, H = 2, 16, 8, 32, 4

    key = jax.random.PRNGKey(0)
    k1, k2, k3, k4, k5 = jax.random.split(key, 5)

    # Deterministic parameter init (PyTorch Linear layout: (out, in)), no bias.
    bound = 1.0 / math.sqrt(D)
    wq = jax.random.uniform(k1, (D, D), jnp.float32, -bound, bound)
    wkv = jax.random.uniform(k2, (2 * D, D), jnp.float32, -bound, bound)
    wo = jax.random.uniform(k3, (D, D), jnp.float32, -bound, bound)

    query = jax.random.normal(k4, (B, Lq, D), jnp.float32)
    context = jax.random.normal(k5, (B, Lk, D), jnp.float32)

    ref = _reference(query, context, wq, wkv, wo, num_heads=H)

    # f32 path; block_q=8 exercises the (B, Lq_tiles) = (2, 2) grid.
    out = multi_head_attention(query, context, wq, wkv, wo, num_heads=H, block_q=8)
    out = jax.block_until_ready(out)
    assert out.shape == (B, Lq, D)
    # Tolerance loosened slightly (vs 1e-4) because of the approximate EUP
    # reciprocal in the softmax denominator.
    assert jnp.allclose(out, ref, rtol=5e-3, atol=5e-3), "f32 kernel mismatch vs reference"

    # bf16-MXU path (f32 accumulation) — smoke check against the f32 reference.
    out_bf16 = multi_head_attention(query, context, wq, wkv, wo, num_heads=H,
                                    block_q=8, mxu_dtype=jnp.bfloat16)
    out_bf16 = jax.block_until_ready(out_bf16)
    assert out_bf16.shape == (B, Lq, D)
    assert float(jnp.max(jnp.abs(out_bf16 - ref))) < 0.1, "bf16 kernel diverged"

    # TODO(synk): dropout_w / dropout_e omitted (eval-mode semantics, p=0 default).
    print("KERNEL_OK")
</pallas_src>

<mosaic_0001>
module attributes {stable_mosaic.version = 11 : i64} {
  func.func @_mha_kernel(%arg0: i32, %arg1: i32, %arg2: memref<1x8x32xf32, #tpu.memory_space<vmem>>, %arg3: memref<1x8x32xf32, #tpu.memory_space<vmem>>, %arg4: memref<32x32xf32, #tpu.memory_space<vmem>>, %arg5: memref<32x64xf32, #tpu.memory_space<vmem>>, %arg6: memref<32x32xf32, #tpu.memory_space<vmem>>, %arg7: memref<1x8x32xf32, #tpu.memory_space<vmem>>) attributes {dimension_semantics = [#tpu.dimension_semantics<parallel>, #tpu.dimension_semantics<parallel>], iteration_bounds = array<i64: 2, 2>, scalar_prefetch = 0 : i64, scratch_operands = 0 : i64, tpu.core_type = #tpu.core_type<tc>, window_params = [{transform_indices = @transform_0, window_bounds = array<i64: 1, 8, 32>}, {transform_indices = @transform_1, window_bounds = array<i64: 1, 8, 32>}, {pipeline_mode = #tpu.pipeline_mode<synchronous>, transform_indices = @transform_2, window_bounds = array<i64: 32, 32>}, {pipeline_mode = #tpu.pipeline_mode<synchronous>, transform_indices = @transform_3, window_bounds = array<i64: 32, 64>}, {pipeline_mode = #tpu.pipeline_mode<synchronous>, transform_indices = @transform_4, window_bounds = array<i64: 32, 32>}, {transform_indices = @transform_5, window_bounds = array<i64: 1, 8, 32>}]} {
    %c0 = arith.constant 0 : index
    %c0_0 = arith.constant 0 : index
    %c0_1 = arith.constant 0 : index
    %0 = vector.load %arg2[%c0, %c0_0, %c0_1] : memref<1x8x32xf32, #tpu.memory_space<vmem>>, vector<1x8x32xf32>
    %1 = vector.shape_cast %0 : vector<1x8x32xf32> to vector<8x32xf32>
    %c0_2 = arith.constant 0 : index
    %c0_3 = arith.constant 0 : index
    %c0_4 = arith.constant 0 : index
    %2 = vector.load %arg3[%c0_2, %c0_3, %c0_4] : memref<1x8x32xf32, #tpu.memory_space<vmem>>, vector<1x8x32xf32>
    %3 = vector.shape_cast %2 : vector<1x8x32xf32> to vector<8x32xf32>
    %c0_5 = arith.constant 0 : index
    %c0_6 = arith.constant 0 : index
    %4 = vector.load %arg4[%c0_5, %c0_6] : memref<32x32xf32, #tpu.memory_space<vmem>>, vector<32x32xf32>
    %cst = arith.constant dense<0.000000e+00> : vector<8x32xf32>
    %5 = tpu.matmul %1, %4, %cst {dimension_numbers = #tpu.dot_dimension_numbers<[1], [0], [0], [1], [0, 0, 1, 1], [], []>} : vector<8x32xf32>, vector<32x32xf32>, vector<8x32xf32> -> vector<8x32xf32>
    %c0_7 = arith.constant 0 : index
    %c0_8 = arith.constant 0 : index
    %6 = vector.load %arg5[%c0_7, %c0_8] : memref<32x64xf32, #tpu.memory_space<vmem>>, vector<32x64xf32>
    %cst_9 = arith.constant dense<0.000000e+00> : vector<8x64xf32>
    %7 = tpu.matmul %3, %6, %cst_9 {dimension_numbers = #tpu.dot_dimension_numbers<[1], [0], [0], [1], [0, 0, 1, 1], [], []>} : vector<8x32xf32>, vector<32x64xf32>, vector<8x64xf32> -> vector<8x64xf32>
    %cst_10 = arith.constant 0.000000e+00 : f32
    %8 = vector.broadcast %cst_10 : f32 to vector<8x32xf32>
    %9 = vector.extract_strided_slice %5 {offsets = [0, 0], sizes = [8, 8], strides = [1, 1]} : vector<8x32xf32> to vector<8x8xf32>
    %10 = vector.extract_strided_slice %7 {offsets = [0, 0], sizes = [8, 8], strides = [1, 1]} : vector<8x64xf32> to vector<8x8xf32>
    %11 = vector.extract_strided_slice %7 {offsets = [0, 32], sizes = [8, 8], strides = [1, 1]} : vector<8x64xf32> to vector<8x8xf32>
    %cst_11 = arith.constant dense<0.000000e+00> : vector<8x8xf32>
    %12 = tpu.matmul %9, %10, %cst_11 {dimension_numbers = #tpu.dot_dimension_numbers<[1], [1], [0], [0], [0, 0, 1, 0], [], []>} : vector<8x8xf32>, vector<8x8xf32>, vector<8x8xf32> -> vector<8x8xf32>
    %cst_12 = arith.constant dense<0xFF800000> : vector<8xf32>
    %13 = vector.multi_reduction <maximumf>, %12, %cst_12 [1] : vector<8x8xf32> to vector<8xf32>
    %14 = vector.shape_cast %13 : vector<8xf32> to vector<8x1xf32>
    %15 = vector.broadcast %14 : vector<8x1xf32> to vector<8x8xf32>
    %16 = arith.subf %12, %15 : vector<8x8xf32>
    %17 = math.exp %16 : vector<8x8xf32>
    %cst_13 = arith.constant dense<0.000000e+00> : vector<8xf32>
    %18 = vector.multi_reduction <add>, %17, %cst_13 [1] : vector<8x8xf32> to vector<8xf32>
    %19 = vector.shape_cast %18 : vector<8xf32> to vector<8x1xf32>
    %20 = tpu.reciprocal %19 {approx = true} : vector<8x1xf32> -> vector<8x1xf32>
    %21 = vector.broadcast %20 : vector<8x1xf32> to vector<8x8xf32>
    %22 = arith.mulf %17, %21 : vector<8x8xf32>
    %cst_14 = arith.constant dense<0.000000e+00> : vector<8x8xf32>
    %23 = tpu.matmul %22, %11, %cst_14 {dimension_numbers = #tpu.dot_dimension_numbers<[1], [0], [0], [1], [0, 0, 1, 1], [], []>} : vector<8x8xf32>, vector<8x8xf32>, vector<8x8xf32> -> vector<8x8xf32>
    %c0_15 = arith.constant 0 : index
    %c0_16 = arith.constant 0 : index
    %24 = vector.load %arg6[%c0_15, %c0_16] : memref<32x32xf32, #tpu.memory_space<vmem>>, vector<8x32xf32>
    %cst_17 = arith.constant dense<0.000000e+00> : vector<8x32xf32>
    %25 = tpu.matmul %23, %24, %cst_17 {dimension_numbers = #tpu.dot_dimension_numbers<[1], [0], [0], [1], [0, 0, 1, 1], [], []>} : vector<8x8xf32>, vector<8x32xf32>, vector<8x32xf32> -> vector<8x32xf32>
    %26 = arith.addf %8, %25 : vector<8x32xf32>
    %27 = vector.extract_strided_slice %5 {offsets = [0, 8], sizes = [8, 8], strides = [1, 1]} : vector<8x32xf32> to vector<8x8xf32>
    %28 = vector.extract_strided_slice %7 {offsets = [0, 8], sizes = [8, 8], strides = [1, 1]} : vector<8x64xf32> to vector<8x8xf32>
    %29 = vector.extract_strided_slice %7 {offsets = [0, 40], sizes = [8, 8], strides = [1, 1]} : vector<8x64xf32> to vector<8x8xf32>
    %cst_18 = arith.constant dense<0.000000e+00> : vector<8x8xf32>
    %30 = tpu.matmul %27, %28, %cst_18 {dimension_numbers = #tpu.dot_dimension_numbers<[1], [1], [0], [0], [0, 0, 1, 0], [], []>} : vector<8x8xf32>, vector<8x8xf32>, vector<8x8xf32> -> vector<8x8xf32>
    %cst_19 = arith.constant dense<0xFF800000> : vector<8xf32>
    %31 = vector.multi_reduction <maximumf>, %30, %cst_19 [1] : vector<8x8xf32> to vector<8xf32>
    %32 = vector.shape_cast %31 : vector<8xf32> to vector<8x1xf32>
    %33 = vector.broadcast %32 : vector<8x1xf32> to vector<8x8xf32>
    %34 = arith.subf %30, %33 : vector<8x8xf32>
    %35 = math.exp %34 : vector<8x8xf32>
    %cst_20 = arith.constant dense<0.000000e+00> : vector<8xf32>
    %36 = vector.multi_reduction <add>, %35, %cst_20 [1] : vector<8x8xf32> to vector<8xf32>
    %37 = vector.shape_cast %36 : vector<8xf32> to vector<8x1xf32>
    %38 = tpu.reciprocal %37 {approx = true} : vector<8x1xf32> -> vector<8x1xf32>
    %39 = vector.broadcast %38 : vector<8x1xf32> to vector<8x8xf32>
    %40 = arith.mulf %35, %39 : vector<8x8xf32>
    %cst_21 = arith.constant dense<0.000000e+00> : vector<8x8xf32>
    %41 = tpu.matmul %40, %29, %cst_21 {dimension_numbers = #tpu.dot_dimension_numbers<[1], [0], [0], [1], [0, 0, 1, 1], [], []>} : vector<8x8xf32>, vector<8x8xf32>, vector<8x8xf32> -> vector<8x8xf32>
    %c8 = arith.constant 8 : index
    %c0_22 = arith.constant 0 : index
    %42 = vector.load %arg6[%c8, %c0_22] : memref<32x32xf32, #tpu.memory_space<vmem>>, vector<8x32xf32>
    %cst_23 = arith.constant dense<0.000000e+00> : vector<8x32xf32>
    %43 = tpu.matmul %41, %42, %cst_23 {dimension_numbers = #tpu.dot_dimension_numbers<[1], [0], [0], [1], [0, 0, 1, 1], [], []>} : vector<8x8xf32>, vector<8x32xf32>, vector<8x32xf32> -> vector<8x32xf32>
    %44 = arith.addf %26, %43 : vector<8x32xf32>
    %45 = vector.extract_strided_slice %5 {offsets = [0, 16], sizes = [8, 8], strides = [1, 1]} : vector<8x32xf32> to vector<8x8xf32>
    %46 = vector.extract_strided_slice %7 {offsets = [0, 16], sizes = [8, 8], strides = [1, 1]} : vector<8x64xf32> to vector<8x8xf32>
    %47 = vector.extract_strided_slice %7 {offsets = [0, 48], sizes = [8, 8], strides = [1, 1]} : vector<8x64xf32> to vector<8x8xf32>
    %cst_24 = arith.constant dense<0.000000e+00> : vector<8x8xf32>
    %48 = tpu.matmul %45, %46, %cst_24 {dimension_numbers = #tpu.dot_dimension_numbers<[1], [1], [0], [0], [0, 0, 1, 0], [], []>} : vector<8x8xf32>, vector<8x8xf32>, vector<8x8xf32> -> vector<8x8xf32>
    %cst_25 = arith.constant dense<0xFF800000> : vector<8xf32>
    %49 = vector.multi_reduction <maximumf>, %48, %cst_25 [1] : vector<8x8xf32> to vector<8xf32>
    %50 = vector.shape_cast %49 : vector<8xf32> to vector<8x1xf32>
    %51 = vector.broadcast %50 : vector<8x1xf32> to vector<8x8xf32>
    %52 = arith.subf %48, %51 : vector<8x8xf32>
    %53 = math.exp %52 : vector<8x8xf32>
    %cst_26 = arith.constant dense<0.000000e+00> : vector<8xf32>
    %54 = vector.multi_reduction <add>, %53, %cst_26 [1] : vector<8x8xf32> to vector<8xf32>
    %55 = vector.shape_cast %54 : vector<8xf32> to vector<8x1xf32>
    %56 = tpu.reciprocal %55 {approx = true} : vector<8x1xf32> -> vector<8x1xf32>
    %57 = vector.broadcast %56 : vector<8x1xf32> to vector<8x8xf32>
    %58 = arith.mulf %53, %57 : vector<8x8xf32>
    %cst_27 = arith.constant dense<0.000000e+00> : vector<8x8xf32>
    %59 = tpu.matmul %58, %47, %cst_27 {dimension_numbers = #tpu.dot_dimension_numbers<[1], [0], [0], [1], [0, 0, 1, 1], [], []>} : vector<8x8xf32>, vector<8x8xf32>, vector<8x8xf32> -> vector<8x8xf32>
    %c16 = arith.constant 16 : index
    %c0_28 = arith.constant 0 : index
    %60 = vector.load %arg6[%c16, %c0_28] : memref<32x32xf32, #tpu.memory_space<vmem>>, vector<8x32xf32>
    %cst_29 = arith.constant dense<0.000000e+00> : vector<8x32xf32>
    %61 = tpu.matmul %59, %60, %cst_29 {dimension_numbers = #tpu.dot_dimension_numbers<[1], [0], [0], [1], [0, 0, 1, 1], [], []>} : vector<8x8xf32>, vector<8x32xf32>, vector<8x32xf32> -> vector<8x32xf32>
    %62 = arith.addf %44, %61 : vector<8x32xf32>
    %63 = vector.extract_strided_slice %5 {offsets = [0, 24], sizes = [8, 8], strides = [1, 1]} : vector<8x32xf32> to vector<8x8xf32>
    %64 = vector.extract_strided_slice %7 {offsets = [0, 24], sizes = [8, 8], strides = [1, 1]} : vector<8x64xf32> to vector<8x8xf32>
    %65 = vector.extract_strided_slice %7 {offsets = [0, 56], sizes = [8, 8], strides = [1, 1]} : vector<8x64xf32> to vector<8x8xf32>
    %cst_30 = arith.constant dense<0.000000e+00> : vector<8x8xf32>
    %66 = tpu.matmul %63, %64, %cst_30 {dimension_numbers = #tpu.dot_dimension_numbers<[1], [1], [0], [0], [0, 0, 1, 0], [], []>} : vector<8x8xf32>, vector<8x8xf32>, vector<8x8xf32> -> vector<8x8xf32>
    %cst_31 = arith.constant dense<0xFF800000> : vector<8xf32>
    %67 = vector.multi_reduction <maximumf>, %66, %cst_31 [1] : vector<8x8xf32> to vector<8xf32>
    %68 = vector.shape_cast %67 : vector<8xf32> to vector<8x1xf32>
    %69 = vector.broadcast %68 : vector<8x1xf32> to vector<8x8xf32>
    %70 = arith.subf %66, %69 : vector<8x8xf32>
    %71 = math.exp %70 : vector<8x8xf32>
    %cst_32 = arith.constant dense<0.000000e+00> : vector<8xf32>
    %72 = vector.multi_reduction <add>, %71, %cst_32 [1] : vector<8x8xf32> to vector<8xf32>
    %73 = vector.shape_cast %72 : vector<8xf32> to vector<8x1xf32>
    %74 = tpu.reciprocal %73 {approx = true} : vector<8x1xf32> -> vector<8x1xf32>
    %75 = vector.broadcast %74 : vector<8x1xf32> to vector<8x8xf32>
    %76 = arith.mulf %71, %75 : vector<8x8xf32>
    %cst_33 = arith.constant dense<0.000000e+00> : vector<8x8xf32>
    %77 = tpu.matmul %76, %65, %cst_33 {dimension_numbers = #tpu.dot_dimension_numbers<[1], [0], [0], [1], [0, 0, 1, 1], [], []>} : vector<8x8xf32>, vector<8x8xf32>, vector<8x8xf32> -> vector<8x8xf32>
    %c24 = arith.constant 24 : index
    %c0_34 = arith.constant 0 : index
    %78 = vector.load %arg6[%c24, %c0_34] : memref<32x32xf32, #tpu.memory_space<vmem>>, vector<8x32xf32>
    %cst_35 = arith.constant dense<0.000000e+00> : vector<8x32xf32>
    %79 = tpu.matmul %77, %78, %cst_35 {dimension_numbers = #tpu.dot_dimension_numbers<[1], [0], [0], [1], [0, 0, 1, 1], [], []>} : vector<8x8xf32>, vector<8x32xf32>, vector<8x32xf32> -> vector<8x32xf32>
    %80 = arith.addf %62, %79 : vector<8x32xf32>
    %c0_36 = arith.constant 0 : index
    %c0_37 = arith.constant 0 : index
    %c0_38 = arith.constant 0 : index
    %81 = vector.load %arg7[%c0_36, %c0_37, %c0_38] : memref<1x8x32xf32, #tpu.memory_space<vmem>>, vector<1x8x32xf32>
    %82 = vector.shape_cast %81 : vector<1x8x32xf32> to vector<8x32xf32>
    %83 = vector.shape_cast %80 : vector<8x32xf32> to vector<1x8x32xf32>
    tpu.vector_store %arg7[%c0_36, %c0_37, %c0_38], %83 {strides = array<i32>} : memref<1x8x32xf32, #tpu.memory_space<vmem>>, vector<1x8x32xf32>,
    return
  }
  func.func @transform_0(%arg0: i32, %arg1: i32) -> (i32, i32, i32) {
    %c0_i32 = arith.constant 0 : i32
    %c0_i32_0 = arith.constant 0 : i32
    return %arg0, %arg1, %c0_i32 : i32, i32, i32
  }
  func.func @transform_1(%arg0: i32, %arg1: i32) -> (i32, i32, i32) {
    %c0_i32 = arith.constant 0 : i32
    %c0_i32_0 = arith.constant 0 : i32
    %c0_i32_1 = arith.constant 0 : i32
    return %arg0, %c0_i32, %c0_i32_0 : i32, i32, i32
  }
  func.func @transform_2(%arg0: i32, %arg1: i32) -> (i32, i32) {
    %c0_i32 = arith.constant 0 : i32
    %c0_i32_0 = arith.constant 0 : i32
    %c0_i32_1 = arith.constant 0 : i32
    return %c0_i32, %c0_i32_0 : i32, i32
  }
  func.func @transform_3(%arg0: i32, %arg1: i32) -> (i32, i32) {
    %c0_i32 = arith.constant 0 : i32
    %c0_i32_0 = arith.constant 0 : i32
    %c0_i32_1 = arith.constant 0 : i32
    return %c0_i32, %c0_i32_0 : i32, i32
  }
  func.func @transform_4(%arg0: i32, %arg1: i32) -> (i32, i32) {
    %c0_i32 = arith.constant 0 : i32
    %c0_i32_0 = arith.constant 0 : i32
    %c0_i32_1 = arith.constant 0 : i32
    return %c0_i32, %c0_i32_0 : i32, i32
  }
  func.func @transform_5(%arg0: i32, %arg1: i32) -> (i32, i32, i32) {
    %c0_i32 = arith.constant 0 : i32
    %c0_i32_0 = arith.constant 0 : i32
    return %arg0, %arg1, %c0_i32 : i32, i32, i32
  }
}

</mosaic_0001>

<llo_original>
// kernel: tpu_custom_call.1
$region0: #{tpu_custom_call.1}
  #allocation0 [shape = 'u32[]', space=smem, size = 0x4, offset = 0x4, fixed_abs, tag = 'smem constant byte address 0x4 - core index']
  #allocation1 [shape = 'u32[144,128]{1,0:T(1,128)}', space=vmem, size = 0x12000, scoped, tag = 'internal scratch']
  %s0 = inlined_call_operand.hbm [shape: f32[2,16,32], index: 0, kind: input, shape index: {}]
  %s1 = inlined_call_operand.hbm [shape: f32[2,8,32], index: 1, kind: input, shape index: {}]
  %s2 = inlined_call_operand.hbm [shape: f32[32,32], index: 2, kind: input, shape index: {}]
  %s3 = inlined_call_operand.hbm [shape: f32[32,64], index: 3, kind: input, shape index: {}]
  %s4 = inlined_call_operand.hbm [shape: f32[32,32], index: 4, kind: input, shape index: {}]
  %s5 = inlined_call_operand.hbm [shape: f32[2,16,32], index: 5, kind: output, shape index: {}]
  %s6 = sld [smem:[#allocation0]]
  $region73: #{tpu_custom_call.1} parent=0
    _
  %s8 = ssub.s32 1, %s6
  %s9 = scalar_select 0, %s8, %s6
  $region1: #{tpu_custom_call.1} parent=0
    #allocation2 [shape = 'u8[8192]{0}', space=vmem, size = 0x2000, scoped, tag = 'input window, operand 0']
    #allocation3 [shape = 's32[2]{0}', space=sflag, size = 0x8, scoped, tag = 'scoped memory for tpu_custom_call.1']
    #allocation4 [shape = 's32[2]{0}', space=sflag, size = 0x8, scoped, tag = 'scoped memory for tpu_custom_call.1']
    #allocation5 [shape = 'u8[8192]{0}', space=vmem, size = 0x2000, scoped, tag = 'input window, operand 1']
    #allocation6 [shape = 's32[2]{0}', space=sflag, size = 0x8, scoped, tag = 'scoped memory for tpu_custom_call.1']
    #allocation7 [shape = 'u8[16384]{0}', space=vmem, size = 0x4000, scoped, tag = 'input window, operand 2, single buffered']
    #allocation8 [shape = 'u8[16384]{0}', space=vmem, size = 0x4000, scoped, tag = 'input window, operand 3, single buffered']
    #allocation9 [shape = 's32[1]{0}', space=sflag, size = 0x4, scoped, tag = 'scoped memory for tpu_custom_call.1']
    #allocation10 [shape = 'u8[16384]{0}', space=vmem, size = 0x4000, scoped, tag = 'input window, operand 4, single buffered']
    #allocation11 [shape = 'u8[8192]{0}', space=vmem, size = 0x2000, scoped, tag = 'output window, operand 0']
    %10 = vsyncpa [#allocation3], 0
    %s11 = scalar_lea.sflag [#allocation3], 1
    %12 = vsyncpa %s11, 0
    %13 = vsyncpa [#allocation6], 0
    %s14 = scalar_lea.sflag [#allocation6], 1
    %15 = vsyncpa %s14, 0
    %16 = vsyncpa [#allocation9], 0
    %17 = vsyncpa [#allocation4], 0
    %s18 = scalar_lea.sflag [#allocation4], 1
    %19 = vsyncpa %s18, 0
    loop: start=0, step=1, limit=6
    $region2: #{tpu_custom_call.1} parent=1 // loop_pre_header
      _
    $region3: #{tpu_custom_call.1} parent=1 // loop_header
      %s21 = sphi 0, %s25
      %p22 = scmp.ge.s32.totalorder %s21, 6
      %s28 = sphi 0, %s40
      %s29 = sphi 0, %s36
      %s30 = sphi 0, %s28
      %s31 = sphi 0, %s29
      %s32 = sphi 0, %s30
      %s33 = sphi 0, %s31
      %s45 = sphi 0, %s47
      %s48 = sphi 0, %s45
      %s49 = sphi 0, %s48
      %s65 = sphi 0, %s49
      %s71 = sphi 0, %s73
      %s74 = sphi 0, %s71
      %s75 = sphi 0, %s74
      %s91 = sphi 0, %s75
      %s95 = sphi 0, %s95
      %s97 = sphi 0, %s95
      %s98 = sphi 0, %s97
      %s112 = sphi 0, %s98
      %s116 = sphi 0, %s116
      %s118 = sphi 0, %s116
      %s119 = sphi 0, %s118
      %s133 = sphi 0, %s119
      %s137 = sphi 0, %s137
      %s139 = sphi 0, %s137
      %s140 = sphi 0, %s139
      %s154 = sphi 0, %s140
      %s162 = sphi 0, %s164
      %s165 = sphi 0, %s162
      %s166 = sphi 0, %s165
      %s182 = sphi 0, %s166
    $region4: #{tpu_custom_call.1} parent=1 // loop_header_branch
      %24 = sbr.rel (%p22) target = $region8
    $region5: #{tpu_custom_call.1} parent=1 // loop_body
      %s26 = ssub.s32 %s21, 1
      %s27 = ssub.s32 %s21, 2
      %s34 = sadd.s32 1, %s29
      %p35 = scmp.ge.s32.totalorder %s34, 2
      %s36 = scalar_select %p35, 0, %s34
      %s37 = sadd.s32 1, %s28
      %s38 = scalar_select %p35, %s37, %s28
      %p39 = scmp.ge.s32.totalorder %s38, 2
      %s40 = scalar_select %p39, 0, %s38
      %s41 = ssub.s32 %s28, %s40
      %s42 = ssub.s32 %s29, %s36
      %s43 = sor.u32 %s41, %s42
      %p44 = scmp.eq.s32.totalorder %s43, 0
      %s46 = sadd.s32 %s45, 1
      %s47 = scalar_select %p44, %s45, %s46
      %p50 = pneg %p44
      %p51 = scmp.eq.s32.totalorder %s21, 3
      %p52 = por %p50, %p51
      %p53 = scmp.ne.s32.totalorder %s45, %s48
      %p54 = scmp.eq.s32.totalorder %s21, 0
      %p55 = por %p53, %p54
      %p56 = scmp.ne.s32.totalorder %s45, %s48
      %p57 = scmp.eq.s32.totalorder %s26, 3
      %p58 = por %p56, %p57
      %p59 = scmp.ne.s32.totalorder %s48, %s49
      %p60 = scmp.eq.s32.totalorder %s26, 0
      %p61 = por %p59, %p60
      %p62 = scmp.ne.s32.totalorder %s48, %s49
      %p63 = scmp.eq.s32.totalorder %s27, 3
      %p64 = por %p62, %p63
      %p66 = scmp.ne.s32.totalorder %s49, %s65
      %p67 = scmp.eq.s32.totalorder %s27, 0
      %p68 = por %p66, %p67
      %s69 = ssub.s32 %s28, %s40
      %p70 = scmp.eq.s32.totalorder %s69, 0
      %s72 = sadd.s32 %s71, 1
      %s73 = scalar_select %p70, %s71, %s72
      %p76 = pneg %p70
      %p77 = scmp.eq.s32.totalorder %s21, 3
      %p78 = por %p76, %p77
      %p79 = scmp.ne.s32.totalorder %s71, %s74
      %p80 = scmp.eq.s32.totalorder %s21, 0
      %p81 = por %p79, %p80
      %p82 = scmp.ne.s32.totalorder %s71, %s74
      %p83 = scmp.eq.s32.totalorder %s26, 3
      %p84 = por %p82, %p83
      %p85 = scmp.ne.s32.totalorder %s74, %s75
      %p86 = scmp.eq.s32.totalorder %s26, 0
      %p87 = por %p85, %p86
      %p88 = scmp.ne.s32.totalorder %s74, %s75
      %p89 = scmp.eq.s32.totalorder %s27, 3
      %p90 = por %p88, %p89
      %p92 = scmp.ne.s32.totalorder %s75, %s91
      %p93 = scmp.eq.s32.totalorder %s27, 0
      %p94 = por %p92, %p93
      %s96 = sadd.s32 %s95, 1
      %p99 = scmp.eq.s32.totalorder %s21, 3
      %p100 = scmp.ne.s32.totalorder %s95, %s97
      %p101 = scmp.eq.s32.totalorder %s21, 0
      %p102 = por %p100, %p101
      %p103 = scmp.ne.s32.totalorder %s95, %s97
      %p104 = scmp.eq.s32.totalorder %s26, 3
      %p105 = por %p103, %p104
      %p106 = scmp.ne.s32.totalorder %s97, %s98
      %p107 = scmp.eq.s32.totalorder %s26, 0
      %p108 = por %p106, %p107
      %p109 = scmp.ne.s32.totalorder %s97, %s98
      %p110 = scmp.eq.s32.totalorder %s27, 3
      %p111 = por %p109, %p110
      %p113 = scmp.ne.s32.totalorder %s98, %s112
      %p114 = scmp.eq.s32.totalorder %s27, 0
      %p115 = por %p113, %p114
      %s117 = sadd.s32 %s116, 1
      %p120 = scmp.eq.s32.totalorder %s21, 3
      %p121 = scmp.ne.s32.totalorder %s116, %s118
      %p122 = scmp.eq.s32.totalorder %s21, 0
      %p123 = por %p121, %p122
      %p124 = scmp.ne.s32.totalorder %s116, %s118
      %p125 = scmp.eq.s32.totalorder %s26, 3
      %p126 = por %p124, %p125
      %p127 = scmp.ne.s32.totalorder %s118, %s119
      %p128 = scmp.eq.s32.totalorder %s26, 0
      %p129 = por %p127, %p128
      %p130 = scmp.ne.s32.totalorder %s118, %s119
      %p131 = scmp.eq.s32.totalorder %s27, 3
      %p132 = por %p130, %p131
      %p134 = scmp.ne.s32.totalorder %s119, %s133
      %p135 = scmp.eq.s32.totalorder %s27, 0
      %p136 = por %p134, %p135
      %s138 = sadd.s32 %s137, 1
      %p141 = scmp.eq.s32.totalorder %s21, 3
      %p142 = scmp.ne.s32.totalorder %s137, %s139
      %p143 = scmp.eq.s32.totalorder %s21, 0
      %p144 = por %p142, %p143
      %p145 = scmp.ne.s32.totalorder %s137, %s139
      %p146 = scmp.eq.s32.totalorder %s26, 3
      %p147 = por %p145, %p146
      %p148 = scmp.ne.s32.totalorder %s139, %s140
      %p149 = scmp.eq.s32.totalorder %s26, 0
      %p150 = por %p148, %p149
      %p151 = scmp.ne.s32.totalorder %s139, %s140
      %p152 = scmp.eq.s32.totalorder %s27, 3
      %p153 = por %p151, %p152
      %p155 = scmp.ne.s32.totalorder %s140, %s154
      %p156 = scmp.eq.s32.totalorder %s27, 0
      %p157 = por %p155, %p156
      %s158 = ssub.s32 %s28, %s40
      %s159 = ssub.s32 %s29, %s36
      %s160 = sor.u32 %s158, %s159
      %p161 = scmp.eq.s32.totalorder %s160, 0
      %s163 = sadd.s32 %s162, 1
      %s164 = scalar_select %p161, %s162, %s163
      %p167 = pneg %p161
      %p168 = scmp.eq.s32.totalorder %s21, 3
      %p169 = por %p167, %p168
      %p170 = scmp.ne.s32.totalorder %s162, %s165
      %p171 = scmp.eq.s32.totalorder %s21, 0
      %p172 = por %p170, %p171
      %p173 = scmp.ne.s32.totalorder %s162, %s165
      %p174 = scmp.eq.s32.totalorder %s26, 3
      %p175 = por %p173, %p174
      %p176 = scmp.ne.s32.totalorder %s165, %s166
      %p177 = scmp.eq.s32.totalorder %s26, 0
      %p178 = por %p176, %p177
      %p179 = scmp.ne.s32.totalorder %s165, %s166
      %p180 = scmp.eq.s32.totalorder %s27, 3
      %p181 = por %p179, %p180
      %p183 = scmp.ne.s32.totalorder %s166, %s182
      %p184 = scmp.eq.s32.totalorder %s27, 0
      %p185 = por %p183, %p184
      %p186 = scmp.le.s32.totalorder 1, %s21
      %p187 = scmp.lt.s32.totalorder %s21, 5
      %p188 = pnand %p186, %p187
      %p189 = pneg %p188
      // Predicated region
      $region9: #{tpu_custom_call.1} parent=5 // pred_check
        _
      $region10: #{tpu_custom_call.1} parent=5 // pred_check_branch
        %191 = sbr.rel (%p188) target = $region12
      $region11: #{tpu_custom_call.1} parent=5 // pred_region
        %s192 = ssub.s32 %s21, 1
        // Predicated region
        $region13: #{tpu_custom_call.1} parent=11 // pred_check
          %p193 = pneg %p108
        $region14: #{tpu_custom_call.1} parent=11 // pred_check_branch
          %195 = sbr.rel (%p193) target = $region16
        $region15: #{tpu_custom_call.1} parent=11 // pred_region
          %s197 = ssub.s32 512, 512
          %198 = vsyncadd [#allocation6], %s197
          %s199 = sshll.u32 [#allocation7], 4
          %s200 = int_to_ptr.vmem [resolvable:$true] %s199
          %205 = dma.hbm_to_vmem [thread:$0]  %s2, 512, %s200, [#allocation6], 128, 128, 8
        $region16: #{tpu_custom_call.1} parent=11 // pred_fallthru
          _
        // Predicated region
        $region17: #{tpu_custom_call.1} parent=11 // pred_check
          %p206 = pneg %p129
        $region18: #{tpu_custom_call.1} parent=11 // pred_check_branch
          %208 = sbr.rel (%p206) target = $region20
        $region19: #{tpu_custom_call.1} parent=11 // pred_region
          %s210 = ssub.s32 512, 512
          %211 = vsyncadd [#allocation9], %s210
          %s212 = sshll.u32 [#allocation8], 4
          %s213 = int_to_ptr.vmem [resolvable:$true] %s212
          %218 = dma.hbm_to_vmem [thread:$0]  %s3, 512, %s213, [#allocation9], 128, 128, 8
        $region20: #{tpu_custom_call.1} parent=11 // pred_fallthru
          _
        // Predicated region
        $region21: #{tpu_custom_call.1} parent=11 // pred_check
          %p219 = pneg %p150
        $region22: #{tpu_custom_call.1} parent=11 // pred_check_branch
          %221 = sbr.rel (%p219) target = $region24
        $region23: #{tpu_custom_call.1} parent=11 // pred_region
          %s223 = ssub.s32 512, 512
          %224 = vsyncadd [#allocation9], %s223
          %s225 = sshll.u32 [#allocation10], 4
          %s226 = int_to_ptr.vmem [resolvable:$true] %s225
          %231 = dma.hbm_to_vmem [thread:$0]  %s4, 512, %s226, [#allocation9], 128, 128, 8
        $region24: #{tpu_custom_call.1} parent=11 // pred_fallthru
          _
      $region12: #{tpu_custom_call.1} parent=5 // pred_fallthru
        _
      %p232 = scmp.lt.s32.totalorder %s21, 4
      // Predicated region
      $region25: #{tpu_custom_call.1} parent=5 // pred_check
        %p233 = pneg %p232
      $region26: #{tpu_custom_call.1} parent=5 // pred_check_branch
        %235 = sbr.rel (%p233) target = $region28
      $region27: #{tpu_custom_call.1} parent=5 // pred_region
        // Predicated region
        $region29: #{tpu_custom_call.1} parent=27 // pred_check
          %p236 = pneg %p55
        $region30: #{tpu_custom_call.1} parent=27 // pred_check_branch
          %238 = sbr.rel (%p236) target = $region32
        $region31: #{tpu_custom_call.1} parent=27 // pred_region
          %s239 = sand.u32 %s45, 1
          %s240 = scalar_lea.sflag [#allocation3], %s239
          %s241 = sand.u32 %s45, 1
          %s242 = smul.addr %s241, 8
          %s243 = scalar_lea.vmem [#allocation2], %s242
          %s245 = ssub.s32 128, 128
          %246 = vsyncadd %s240, %s245
          %s247 = smul.addr %s28, 2
          %s248 = sadd.s32 %s29, %s247
          %s249 = smul.addr %s248, 128
          %s250 = scalar_lea.hbm %s0, %s249
          %s252 = sshll.u32 %s243, 4
          %s253 = int_to_ptr.vmem [resolvable:$true] %s252
          %255 = dma.hbm_to_vmem [thread:$0]  %s250, 128, %s253, %s240
        $region32: #{tpu_custom_call.1} parent=27 // pred_fallthru
          _
        // Predicated region
        $region33: #{tpu_custom_call.1} parent=27 // pred_check
          %p256 = pneg %p81
        $region34: #{tpu_custom_call.1} parent=27 // pred_check_branch
          %258 = sbr.rel (%p256) target = $region36
        $region35: #{tpu_custom_call.1} parent=27 // pred_region
          %s259 = sand.u32 %s21, 1
          %s260 = scalar_lea.sflag [#allocation6], %s259
          %s261 = sand.u32 %s71, 1
          %s262 = smul.addr %s261, 8
          %s263 = scalar_lea.vmem [#allocation5], %s262
          %s265 = ssub.s32 128, 128
          %266 = vsyncadd %s260, %s265
          %s267 = smul.addr %s28, 128
          %s268 = scalar_lea.hbm %s1, %s267
          %s270 = sshll.u32 %s263, 4
          %s271 = int_to_ptr.vmem [resolvable:$true] %s270
          %273 = dma.hbm_to_vmem [thread:$0]  %s268, 128, %s271, %s260
        $region36: #{tpu_custom_call.1} parent=27 // pred_fallthru
          _
      $region28: #{tpu_custom_call.1} parent=5 // pred_fallthru
        _
      %p274 = scmp.le.s32.totalorder 1, %s21
      %p275 = scmp.lt.s32.totalorder %s21, 5
      %p276 = pnand %p274, %p275
      %p277 = pneg %p276
      // Predicated region
      $region37: #{tpu_custom_call.1} parent=5 // pred_check
        _
      $region38: #{tpu_custom_call.1} parent=5 // pred_check_branch
        %279 = sbr.rel (%p276) target = $region40
      $region39: #{tpu_custom_call.1} parent=5 // pred_region
        %s280 = ssub.s32 %s21, 1
        %s281 = sand.u32 %s48, 1
        %s282 = scalar_lea.sflag [#allocation3], %s281
        %s283 = sand.u32 %s48, 1
        %s284 = smul.addr %s283, 8
        %s285 = scalar_lea.vmem [#allocation2], %s284
        // Predicated region
        $region41: #{tpu_custom_call.1} parent=39 // pred_check
          %p286 = pneg %p61
        $region42: #{tpu_custom_call.1} parent=39 // pred_check_branch
          %288 = sbr.rel (%p286) target = $region44
        $region43: #{tpu_custom_call.1} parent=39 // pred_region
          %289 = dma.done %s282, 128
        $region44: #{tpu_custom_call.1} parent=39 // pred_fallthru
          _
        %s290 = sand.u32 %s26, 1
        %s291 = scalar_lea.sflag [#allocation6], %s290
        %s292 = sand.u32 %s74, 1
        %s293 = smul.addr %s292, 8
        %s294 = scalar_lea.vmem [#allocation5], %s293
        // Predicated region
        $region45: #{tpu_custom_call.1} parent=39 // pred_check
          %p295 = pneg %p87
        $region46: #{tpu_custom_call.1} parent=39 // pred_check_branch
          %297 = sbr.rel (%p295) target = $region48
        $region47: #{tpu_custom_call.1} parent=39 // pred_region
          %298 = dma.done %s291, 128
        $region48: #{tpu_custom_call.1} parent=39 // pred_fallthru
          _
        // Predicated region
        $region49: #{tpu_custom_call.1} parent=39 // pred_check
          %p299 = pneg %p108
        $region50: #{tpu_custom_call.1} parent=39 // pred_check_branch
          %301 = sbr.rel (%p299) target = $region52
        $region51: #{tpu_custom_call.1} parent=39 // pred_region
          %302 = dma.done [#allocation6], 512
        $region52: #{tpu_custom_call.1} parent=39 // pred_fallthru
          _
        // Predicated region
        $region53: #{tpu_custom_call.1} parent=39 // pred_check
          %p303 = pneg %p129
        $region54: #{tpu_custom_call.1} parent=39 // pred_check_branch
          %305 = sbr.rel (%p303) target = $region56
        $region55: #{tpu_custom_call.1} parent=39 // pred_region
          %306 = dma.done [#allocation9], 512
        $region56: #{tpu_custom_call.1} parent=39 // pred_fallthru
          _
        // Predicated region
        $region57: #{tpu_custom_call.1} parent=39 // pred_check
          %p307 = pneg %p150
        $region58: #{tpu_custom_call.1} parent=39 // pred_check_branch
          %309 = sbr.rel (%p307) target = $region60
        $region59: #{tpu_custom_call.1} parent=39 // pred_region
          %310 = dma.done [#allocation9], 512
        $region60: #{tpu_custom_call.1} parent=39 // pred_fallthru
          _
        %s311 = sand.u32 %s48, 1
        %s312 = scalar_lea.sflag [#allocation3], %s311
        %s313 = sand.u32 %s48, 1
        %s314 = smul.addr %s313, 8
        %s315 = scalar_lea.vmem [#allocation2], %s314
        %p316 = pneg %p61
        %p317 = pneg %p58
        %s318 = sand.u32 %s26, 1
        %s319 = scalar_lea.sflag [#allocation6], %s318
        %s320 = sand.u32 %s74, 1
        %s321 = smul.addr %s320, 8
        %s322 = scalar_lea.vmem [#allocation5], %s321
        %p323 = pneg %p87
        %p324 = pneg %p84
        %p325 = pneg %p108
        %p326 = pneg %p105
        %p327 = pneg %p129
        %p328 = pneg %p126
        %p329 = pneg %p150
        %p330 = pneg %p147
        %p331 = pneg %p178
        %p332 = pneg %p175
        %s333 = sand.u32 %s165, 1
        %s334 = scalar_lea.sflag [#allocation4], %s333
        %s335 = sand.u32 %s165, 1
        %s336 = smul.addr %s335, 8
        %s337 = scalar_lea.vmem [#allocation11], %s336
        %v338 = vld [vmem:[%s285] sm:$0xff]
        %v339 = vld [vmem:[%s294] sm:$0xff]
        %v340 = vld [vmem:[#allocation7] sm:$0xff]
        %v341 = vld [vmem:[#allocation7 + $0x8] sm:$0xff]
        %v342 = vld [vmem:[#allocation7 + $0x10] sm:$0xff]
        %v343 = vld [vmem:[#allocation7 + $0x18] sm:$0xff]
        %vm344 = vcmask 261120
        %v346 = vsel %vm344, %v338, 0
        %348 = vmatprep.subr.mxu0 0.0
        %349 = vmatpush1.msra.mxu0 0.0
        %350 = vmatprep.subr.mxu0 0.0
        %351 = vmatpush1.msra.mxu0 0.0
        %352 = vmatprep.subr.mxu0 0.0
        %353 = vmatpush1.msra.mxu0 0.0
        %354 = vmatprep.subr.mxu0 0.0
        %355 = vmatpush1.msra.mxu0 0.0
        %356 = vmatprep.subr.mxu0 0.0
        %357 = vmatpush1.msra.mxu0 0.0
        %358 = vmatprep.subr.mxu0 0.0
        %359 = vmatpush1.msra.mxu0 0.0
        %360 = vmatprep.subr.mxu0 0.0
        %361 = vmatpush1.msra.mxu0 0.0
        %362 = vmatprep.subr.mxu0 0.0
        %363 = vmatpush1.msra.mxu0 0.0
        %364 = vmatprep.subr.mxu0 0.0
        %365 = vmatpush1.msra.mxu0 0.0
        %366 = vmatprep.subr.mxu0 0.0
        %367 = vmatpush1.msra.mxu0 0.0
        %368 = vmatprep.subr.mxu0 0.0
        %369 = vmatpush1.msra.mxu0 0.0
        %370 = vmatprep.subr.mxu0 0.0
        %371 = vmatpush1.msra.mxu0 0.0
        %372 = vmatprep.subr.mxu0 0.0
        %373 = vmatpush1.msra.mxu0 %v343
        %374 = vmatprep.subr.mxu0 0.0
        %375 = vmatpush1.msra.mxu0 %v342
        %376 = vmatprep.subr.mxu0 0.0
        %377 = vmatpush1.msra.mxu0 %v341
        %378 = vmatprep.subr.mxu0 0.0
        %379 = vmatpush1.msra.mxu0 %v340
        %380 = vmatprep.subr.mxu0 0.0
        %381 = vmatpush2.msra.mxu0 0.0
        %382 = vmatprep.subr.mxu0 0.0
        %383 = vmatpush2.msra.mxu0 0.0
        %384 = vmatprep.subr.mxu0 0.0
        %385 = vmatpush2.msra.mxu0 0.0
        %386 = vmatprep.subr.mxu0 0.0
        %387 = vmatpush2.msra.mxu0 0.0
        %388 = vmatprep.subr.mxu0 0.0
        %389 = vmatpush2.msra.mxu0 0.0
        %390 = vmatprep.subr.mxu0 0.0
        %391 = vmatpush2.msra.mxu0 0.0
        %392 = vmatprep.subr.mxu0 0.0
        %393 = vmatpush2.msra.mxu0 0.0
        %394 = vmatprep.subr.mxu0 0.0
        %395 = vmatpush2.msra.mxu0 0.0
        %396 = vmatprep.subr.mxu0 0.0
        %397 = vmatpush2.msra.mxu0 0.0
        %398 = vmatprep.subr.mxu0 0.0
        %399 = vmatpush2.msra.mxu0 0.0
        %400 = vmatprep.subr.mxu0 0.0
        %401 = vmatpush2.msra.mxu0 0.0
        %402 = vmatprep.subr.mxu0 0.0
        %403 = vmatpush2.msra.mxu0 0.0
        %404 = vmatprep.subr.mxu0 0.0
        %405 = vmatpush2.msra.mxu0 0.0
        %406 = vmatprep.subr.mxu0 0.0
        %407 = vmatpush2.msra.mxu0 0.0
        %408 = vmatprep.subr.mxu0 0.0
        %409 = vmatpush2.msra.mxu0 0.0
        %410 = vmatprep.subr.mxu0 0.0
        %411 = vmatpush2.msra.mxu0 0.0
        %412 = vmatprep.mubr.f32.mxu0 0.0
        %413 = vmatmul.mubr.f32.gmra.mxu0 %v346
        %v414 = vpop.f32.mrf.mxu0
        %v415 = vadd.f32 0.0, %v414
        %v416 = vpop.f32.mrf.mxu0
        %417 = vdwg.mxu0
        %v418 = vld [vmem:[#allocation8] sm:$0xff]
        %v419 = vld [vmem:[#allocation8 + $0x8] sm:$0xff]
        %v420 = vld [vmem:[#allocation8 + $0x10] sm:$0xff]
        %v421 = vld [vmem:[#allocation8 + $0x18] sm:$0xff]
        %v423 = vsel %vm344, %v339, 0
        %425 = vmatprep.subr.mxu0 0.0
        %426 = vmatpush1.msra.mxu0 0.0
        %427 = vmatprep.subr.mxu0 0.0
        %428 = vmatpush1.msra.mxu0 0.0
        %429 = vmatprep.subr.mxu0 0.0
        %430 = vmatpush1.msra.mxu0 0.0
        %431 = vmatprep.subr.mxu0 0.0
        %432 = vmatpush1.msra.mxu0 0.0
        %433 = vmatprep.subr.mxu0 0.0
        %434 = vmatpush1.msra.mxu0 0.0
        %435 = vmatprep.subr.mxu0 0.0
        %436 = vmatpush1.msra.mxu0 0.0
        %437 = vmatprep.subr.mxu0 0.0
        %438 = vmatpush1.msra.mxu0 0.0
        %439 = vmatprep.subr.mxu0 0.0
        %440 = vmatpush1.msra.mxu0 0.0
        %441 = vmatprep.subr.mxu0 0.0
        %442 = vmatpush1.msra.mxu0 0.0
        %443 = vmatprep.subr.mxu0 0.0
        %444 = vmatpush1.msra.mxu0 0.0
        %445 = vmatprep.subr.mxu0 0.0
        %446 = vmatpush1.msra.mxu0 0.0
        %447 = vmatprep.subr.mxu0 0.0
        %448 = vmatpush1.msra.mxu0 0.0
        %449 = vmatprep.subr.mxu0 0.0
        %450 = vmatpush1.msra.mxu0 %v421
        %451 = vmatprep.subr.mxu0 0.0
        %452 = vmatpush1.msra.mxu0 %v420
        %453 = vmatprep.subr.mxu0 0.0
        %454 = vmatpush1.msra.mxu0 %v419
        %455 = vmatprep.subr.mxu0 0.0
        %456 = vmatpush1.msra.mxu0 %v418
        %457 = vmatprep.subr.mxu0 0.0
        %458 = vmatpush2.msra.mxu0 0.0
        %459 = vmatprep.subr.mxu0 0.0
        %460 = vmatpush2.msra.mxu0 0.0
        %461 = vmatprep.subr.mxu0 0.0
        %462 = vmatpush2.msra.mxu0 0.0
        %463 = vmatprep.subr.mxu0 0.0
        %464 = vmatpush2.msra.mxu0 0.0
        %465 = vmatprep.subr.mxu0 0.0
        %466 = vmatpush2.msra.mxu0 0.0
        %467 = vmatprep.subr.mxu0 0.0
        %468 = vmatpush2.msra.mxu0 0.0
        %469 = vmatprep.subr.mxu0 0.0
        %470 = vmatpush2.msra.mxu0 0.0
        %471 = vmatprep.subr.mxu0 0.0
        %472 = vmatpush2.msra.mxu0 0.0
        %473 = vmatprep.subr.mxu0 0.0
        %474 = vmatpush2.msra.mxu0 0.0
        %475 = vmatprep.subr.mxu0 0.0
        %476 = vmatpush2.msra.mxu0 0.0
        %477 = vmatprep.subr.mxu0 0.0
        %478 = vmatpush2.msra.mxu0 0.0
        %479 = vmatprep.subr.mxu0 0.0
        %480 = vmatpush2.msra.mxu0 0.0
        %481 = vmatprep.subr.mxu0 0.0
        %482 = vmatpush2.msra.mxu0 0.0
        %483 = vmatprep.subr.mxu0 0.0
        %484 = vmatpush2.msra.mxu0 0.0
        %485 = vmatprep.subr.mxu0 0.0
        %486 = vmatpush2.msra.mxu0 0.0
        %487 = vmatprep.subr.mxu0 0.0
        %488 = vmatpush2.msra.mxu0 0.0
        %489 = vmatprep.mubr.f32.mxu0 0.0
        %490 = vmatmul.mubr.f32.gmra.mxu0 %v423
        %v491 = vpop.f32.mrf.mxu0
        %v492 = vadd.f32 0.0, %v491
        %v493 = vpop.f32.mrf.mxu0
        %494 = vdwg.mxu0
        %vm495 = vcmask 64512
        %v497 = vsel %vm495, %v415, 0
        %v500 = vsel %vm495, %v492, 0
        %502 = vmatprep.subr.mxu0 0.0
        %503 = vmatpush1.xpose.msra.mxu0 0.0
        %504 = vmatprep.subr.mxu0 0.0
        %505 = vmatpush1.xpose.msra.mxu0 0.0
        %506 = vmatprep.subr.mxu0 0.0
        %507 = vmatpush1.xpose.msra.mxu0 0.0
        %508 = vmatprep.subr.mxu0 0.0
        %509 = vmatpush1.xpose.msra.mxu0 0.0
        %510 = vmatprep.subr.mxu0 0.0
        %511 = vmatpush1.xpose.msra.mxu0 0.0
        %512 = vmatprep.subr.mxu0 0.0
        %513 = vmatpush1.xpose.msra.mxu0 0.0
        %514 = vmatprep.subr.mxu0 0.0
        %515 = vmatpush1.xpose.msra.mxu0 0.0
        %516 = vmatprep.subr.mxu0 0.0
        %517 = vmatpush1.xpose.msra.mxu0 0.0
        %518 = vmatprep.subr.mxu0 0.0
        %519 = vmatpush1.xpose.msra.mxu0 0.0
        %520 = vmatprep.subr.mxu0 0.0
        %521 = vmatpush1.xpose.msra.mxu0 0.0
        %522 = vmatprep.subr.mxu0 0.0
        %523 = vmatpush1.xpose.msra.mxu0 0.0
        %524 = vmatprep.subr.mxu0 0.0
        %525 = vmatpush1.xpose.msra.mxu0 0.0
        %526 = vmatprep.subr.mxu0 0.0
        %527 = vmatpush1.xpose.msra.mxu0 0.0
        %528 = vmatprep.subr.mxu0 0.0
        %529 = vmatpush1.xpose.msra.mxu0 0.0
        %530 = vmatprep.subr.mxu0 0.0
        %531 = vmatpush1.xpose.msra.mxu0 0.0
        %532 = vmatprep.subr.mxu0 0.0
        %533 = vmatpush1.xpose.msra.mxu0 %v500
        %534 = vmatprep.subr.mxu0 0.0
        %535 = vmatpush2.xpose.msra.mxu0 0.0
        %536 = vmatprep.subr.mxu0 0.0
        %537 = vmatpush2.xpose.msra.mxu0 0.0
        %538 = vmatprep.subr.mxu0 0.0
        %539 = vmatpush2.xpose.msra.mxu0 0.0
        %540 = vmatprep.subr.mxu0 0.0
        %541 = vmatpush2.xpose.msra.mxu0 0.0
        %542 = vmatprep.subr.mxu0 0.0
        %543 = vmatpush2.xpose.msra.mxu0 0.0
        %544 = vmatprep.subr.mxu0 0.0
        %545 = vmatpush2.xpose.msra.mxu0 0.0
        %546 = vmatprep.subr.mxu0 0.0
        %547 = vmatpush2.xpose.msra.mxu0 0.0
        %548 = vmatprep.subr.mxu0 0.0
        %549 = vmatpush2.xpose.msra.mxu0 0.0
        %550 = vmatprep.subr.mxu0 0.0
        %551 = vmatpush2.xpose.msra.mxu0 0.0
        %552 = vmatprep.subr.mxu0 0.0
        %553 = vmatpush2.xpose.msra.mxu0 0.0
        %554 = vmatprep.subr.mxu0 0.0
        %555 = vmatpush2.xpose.msra.mxu0 0.0
        %556 = vmatprep.subr.mxu0 0.0
        %557 = vmatpush2.xpose.msra.mxu0 0.0
        %558 = vmatprep.subr.mxu0 0.0
        %559 = vmatpush2.xpose.msra.mxu0 0.0
        %560 = vmatprep.subr.mxu0 0.0
        %561 = vmatpush2.xpose.msra.mxu0 0.0
        %562 = vmatprep.subr.mxu0 0.0
        %563 = vmatpush2.xpose.msra.mxu0 0.0
        %564 = vmatprep.subr.mxu0 0.0
        %565 = vmatpush2.xpose.msra.mxu0 0.0
        %566 = vmatprep.mubr.f32.mxu0 0.0
        %567 = vmatmul.mubr.f32.gmra.mxu0 %v497
        %v568 = vpop.f32.mrf.mxu0
        %v569 = vadd.f32 0.0, %v568
        %v570 = vpop.f32.mrf.mxu0
        %571 = vdwg.mxu0
        %v572 = vsel %vm495, %v569, -inf
        %573 = vmax.xlane.f32.xlu0 %v572
        %v574 = vpop.xlane.xlu0 %573
        %v575 = vsub.f32 %v569, %v574
        %v576 = vmul.f32 %v575, 1.442695
        %v577 = vpow.pop %v576
        %v578 = vsel %vm495, %v577, 0.0
        %579 = vadd.xlane.f32.xlu0 %v578
        %v580 = vpop.xlane.xlu0 %579
        %v581 = vrcp.pop %v580
        %v582 = vmul.f32 %v577, %v581
        %583 = vrot.lane.b32.xlu0 %v492, 96
        %v584 = vpop.permute.xlu0 %583
        %v587 = vsel %vm495, %v582, 0
        %589 = vmatprep.subr.mxu0 0.0
        %590 = vmatpush1.msra.mxu0 0.0
        %591 = vmatprep.subr.mxu0 0.0
        %592 = vmatpush1.msra.mxu0 0.0
        %593 = vmatprep.subr.mxu0 0.0
        %594 = vmatpush1.msra.mxu0 0.0
        %595 = vmatprep.subr.mxu0 0.0
        %596 = vmatpush1.msra.mxu0 0.0
        %597 = vmatprep.subr.mxu0 0.0
        %598 = vmatpush1.msra.mxu0 0.0
        %599 = vmatprep.subr.mxu0 0.0
        %600 = vmatpush1.msra.mxu0 0.0
        %601 = vmatprep.subr.mxu0 0.0
        %602 = vmatpush1.msra.mxu0 0.0
        %603 = vmatprep.subr.mxu0 0.0
        %604 = vmatpush1.msra.mxu0 0.0
        %605 = vmatprep.subr.mxu0 0.0
        %606 = vmatpush1.msra.mxu0 0.0
        %607 = vmatprep.subr.mxu0 0.0
        %608 = vmatpush1.msra.mxu0 0.0
        %609 = vmatprep.subr.mxu0 0.0
        %610 = vmatpush1.msra.mxu0 0.0
        %611 = vmatprep.subr.mxu0 0.0
        %612 = vmatpush1.msra.mxu0 0.0
        %613 = vmatprep.subr.mxu0 0.0
        %614 = vmatpush1.msra.mxu0 0.0
        %615 = vmatprep.subr.mxu0 0.0
        %616 = vmatpush1.msra.mxu0 0.0
        %617 = vmatprep.subr.mxu0 0.0
        %618 = vmatpush1.msra.mxu0 0.0
        %619 = vmatprep.subr.mxu0 0.0
        %620 = vmatpush1.msra.mxu0 %v584
        %621 = vmatprep.subr.mxu0 0.0
        %622 = vmatpush2.msra.mxu0 0.0
        %623 = vmatprep.subr.mxu0 0.0
        %624 = vmatpush2.msra.mxu0 0.0
        %625 = vmatprep.subr.mxu0 0.0
        %626 = vmatpush2.msra.mxu0 0.0
        %627 = vmatprep.subr.mxu0 0.0
        %628 = vmatpush2.msra.mxu0 0.0
        %629 = vmatprep.subr.mxu0 0.0
        %630 = vmatpush2.msra.mxu0 0.0
        %631 = vmatprep.subr.mxu0 0.0
        %632 = vmatpush2.msra.mxu0 0.0
        %633 = vmatprep.subr.mxu0 0.0
        %634 = vmatpush2.msra.mxu0 0.0
        %635 = vmatprep.subr.mxu0 0.0
        %636 = vmatpush2.msra.mxu0 0.0
        %637 = vmatprep.subr.mxu0 0.0
        %638 = vmatpush2.msra.mxu0 0.0
        %639 = vmatprep.subr.mxu0 0.0
        %640 = vmatpush2.msra.mxu0 0.0
        %641 = vmatprep.subr.mxu0 0.0
        %642 = vmatpush2.msra.mxu0 0.0
        %643 = vmatprep.subr.mxu0 0.0
        %644 = vmatpush2.msra.mxu0 0.0
        %645 = vmatprep.subr.mxu0 0.0
        %646 = vmatpush2.msra.mxu0 0.0
        %647 = vmatprep.subr.mxu0 0.0
        %648 = vmatpush2.msra.mxu0 0.0
        %649 = vmatprep.subr.mxu0 0.0
        %650 = vmatpush2.msra.mxu0 0.0
        %651 = vmatprep.subr.mxu0 0.0
        %652 = vmatpush2.msra.mxu0 0.0
        %653 = vmatprep.mubr.f32.mxu0 0.0
        %654 = vmatmul.mubr.f32.gmra.mxu0 %v587
        %v655 = vpop.f32.mrf.mxu0
        %v656 = vadd.f32 0.0, %v655
        %v657 = vpop.f32.mrf.mxu0
        %658 = vdwg.mxu0
        %v659 = vld [vmem:[#allocation10] sm:$0xff]
        %660 = vrot.lane.b32.xlu0 %v415, 120
        %v661 = vpop.permute.xlu0 %660
        %662 = vrot.lane.b32.xlu0 %v492, 120
        %v663 = vpop.permute.xlu0 %662
        %v664 = vsel %vm495, %v661, 0
        %v666 = vsel %vm495, %v663, 0
        %668 = vmatprep.subr.mxu0 0.0
        %669 = vmatpush1.xpose.msra.mxu0 0.0
        %670 = vmatprep.subr.mxu0 0.0
        %671 = vmatpush1.xpose.msra.mxu0 0.0
        %672 = vmatprep.subr.mxu0 0.0
        %673 = vmatpush1.xpose.msra.mxu0 0.0
        %674 = vmatprep.subr.mxu0 0.0
        %675 = vmatpush1.xpose.msra.mxu0 0.0
        %676 = vmatprep.subr.mxu0 0.0
        %677 = vmatpush1.xpose.msra.mxu0 0.0
        %678 = vmatprep.subr.mxu0 0.0
        %679 = vmatpush1.xpose.msra.mxu0 0.0
        %680 = vmatprep.subr.mxu0 0.0
        %681 = vmatpush1.xpose.msra.mxu0 0.0
        %682 = vmatprep.subr.mxu0 0.0
        %683 = vmatpush1.xpose.msra.mxu0 0.0
        %684 = vmatprep.subr.mxu0 0.0
        %685 = vmatpush1.xpose.msra.mxu0 0.0
        %686 = vmatprep.subr.mxu0 0.0
        %687 = vmatpush1.xpose.msra.mxu0 0.0
        %688 = vmatprep.subr.mxu0 0.0
        %689 = vmatpush1.xpose.msra.mxu0 0.0
        %690 = vmatprep.subr.mxu0 0.0
        %691 = vmatpush1.xpose.msra.mxu0 0.0
        %692 = vmatprep.subr.mxu0 0.0
        %693 = vmatpush1.xpose.msra.mxu0 0.0
        %694 = vmatprep.subr.mxu0 0.0
        %695 = vmatpush1.xpose.msra.mxu0 0.0
        %696 = vmatprep.subr.mxu0 0.0
        %697 = vmatpush1.xpose.msra.mxu0 0.0
        %698 = vmatprep.subr.mxu0 0.0
        %699 = vmatpush1.xpose.msra.mxu0 %v666
        %700 = vmatprep.subr.mxu0 0.0
        %701 = vmatpush2.xpose.msra.mxu0 0.0
        %702 = vmatprep.subr.mxu0 0.0
        %703 = vmatpush2.xpose.msra.mxu0 0.0
        %704 = vmatprep.subr.mxu0 0.0
        %705 = vmatpush2.xpose.msra.mxu0 0.0
        %706 = vmatprep.subr.mxu0 0.0
        %707 = vmatpush2.xpose.msra.mxu0 0.0
        %708 = vmatprep.subr.mxu0 0.0
        %709 = vmatpush2.xpose.msra.mxu0 0.0
        %710 = vmatprep.subr.mxu0 0.0
        %711 = vmatpush2.xpose.msra.mxu0 0.0
        %712 = vmatprep.subr.mxu0 0.0
        %713 = vmatpush2.xpose.msra.mxu0 0.0
        %714 = vmatprep.subr.mxu0 0.0
        %715 = vmatpush2.xpose.msra.mxu0 0.0
        %716 = vmatprep.subr.mxu0 0.0
        %717 = vmatpush2.xpose.msra.mxu0 0.0
        %718 = vmatprep.subr.mxu0 0.0
        %719 = vmatpush2.xpose.msra.mxu0 0.0
        %720 = vmatprep.subr.mxu0 0.0
        %721 = vmatpush2.xpose.msra.mxu0 0.0
        %722 = vmatprep.subr.mxu0 0.0
        %723 = vmatpush2.xpose.msra.mxu0 0.0
        %724 = vmatprep.subr.mxu0 0.0
        %725 = vmatpush2.xpose.msra.mxu0 0.0
        %726 = vmatprep.subr.mxu0 0.0
        %727 = vmatpush2.xpose.msra.mxu0 0.0
        %728 = vmatprep.subr.mxu0 0.0
        %729 = vmatpush2.xpose.msra.mxu0 0.0
        %730 = vmatprep.subr.mxu0 0.0
        %731 = vmatpush2.xpose.msra.mxu0 0.0
        %732 = vmatprep.mubr.f32.mxu0 0.0
        %733 = vmatmul.mubr.f32.gmra.mxu0 %v664
        %v734 = vpop.f32.mrf.mxu0
        %v735 = vadd.f32 0.0, %v734
        %v736 = vpop.f32.mrf.mxu0
        %737 = vdwg.mxu0
        %v738 = vsel %vm495, %v735, -inf
        %739 = vmax.xlane.f32.xlu0 %v738
        %v740 = vpop.xlane.xlu0 %739
        %v741 = vsub.f32 %v735, %v740
        %v742 = vmul.f32 %v741, 1.442695
        %v743 = vpow.pop %v742
        %v744 = vsel %vm495, %v743, 0.0
        %745 = vadd.xlane.f32.xlu0 %v744
        %v746 = vpop.xlane.xlu0 %745
        %v747 = vrcp.pop %v746
        %v748 = vmul.f32 %v743, %v747
        %749 = vrot.lane.b32.xlu0 %v492, 88
        %v750 = vpop.permute.xlu0 %749
        %v753 = vsel %vm495, %v748, 0
        %755 = vmatprep.subr.mxu0 0.0
        %756 = vmatpush1.msra.mxu0 0.0
        %757 = vmatprep.subr.mxu0 0.0
        %758 = vmatpush1.msra.mxu0 0.0
        %759 = vmatprep.subr.mxu0 0.0
        %760 = vmatpush1.msra.mxu0 0.0
        %761 = vmatprep.subr.mxu0 0.0
        %762 = vmatpush1.msra.mxu0 0.0
        %763 = vmatprep.subr.mxu0 0.0
        %764 = vmatpush1.msra.mxu0 0.0
        %765 = vmatprep.subr.mxu0 0.0
        %766 = vmatpush1.msra.mxu0 0.0
        %767 = vmatprep.subr.mxu0 0.0
        %768 = vmatpush1.msra.mxu0 0.0
        %769 = vmatprep.subr.mxu0 0.0
        %770 = vmatpush1.msra.mxu0 0.0
        %771 = vmatprep.subr.mxu0 0.0
        %772 = vmatpush1.msra.mxu0 0.0
        %773 = vmatprep.subr.mxu0 0.0
        %774 = vmatpush1.msra.mxu0 0.0
        %775 = vmatprep.subr.mxu0 0.0
        %776 = vmatpush1.msra.mxu0 0.0
        %777 = vmatprep.subr.mxu0 0.0
        %778 = vmatpush1.msra.mxu0 0.0
        %779 = vmatprep.subr.mxu0 0.0
        %780 = vmatpush1.msra.mxu0 0.0
        %781 = vmatprep.subr.mxu0 0.0
        %782 = vmatpush1.msra.mxu0 0.0
        %783 = vmatprep.subr.mxu0 0.0
        %784 = vmatpush1.msra.mxu0 0.0
        %785 = vmatprep.subr.mxu0 0.0
        %786 = vmatpush1.msra.mxu0 %v750
        %787 = vmatprep.subr.mxu0 0.0
        %788 = vmatpush2.msra.mxu0 0.0
        %789 = vmatprep.subr.mxu0 0.0
        %790 = vmatpush2.msra.mxu0 0.0
        %791 = vmatprep.subr.mxu0 0.0
        %792 = vmatpush2.msra.mxu0 0.0
        %793 = vmatprep.subr.mxu0 0.0
        %794 = vmatpush2.msra.mxu0 0.0
        %795 = vmatprep.subr.mxu0 0.0
        %796 = vmatpush2.msra.mxu0 0.0
        %797 = vmatprep.subr.mxu0 0.0
        %798 = vmatpush2.msra.mxu0 0.0
        %799 = vmatprep.subr.mxu0 0.0
        %800 = vmatpush2.msra.mxu0 0.0
        %801 = vmatprep.subr.mxu0 0.0
        %802 = vmatpush2.msra.mxu0 0.0
        %803 = vmatprep.subr.mxu0 0.0
        %804 = vmatpush2.msra.mxu0 0.0
        %805 = vmatprep.subr.mxu0 0.0
        %806 = vmatpush2.msra.mxu0 0.0
        %807 = vmatprep.subr.mxu0 0.0
        %808 = vmatpush2.msra.mxu0 0.0
        %809 = vmatprep.subr.mxu0 0.0
        %810 = vmatpush2.msra.mxu0 0.0
        %811 = vmatprep.subr.mxu0 0.0
        %812 = vmatpush2.msra.mxu0 0.0
        %813 = vmatprep.subr.mxu0 0.0
        %814 = vmatpush2.msra.mxu0 0.0
        %815 = vmatprep.subr.mxu0 0.0
        %816 = vmatpush2.msra.mxu0 0.0
        %817 = vmatprep.subr.mxu0 0.0
        %818 = vmatpush2.msra.mxu0 0.0
        %819 = vmatprep.mubr.f32.mxu0 0.0
        %820 = vmatmul.mubr.f32.gmra.mxu0 %v753
        %v821 = vpop.f32.mrf.mxu0
        %v822 = vadd.f32 0.0, %v821
        %v823 = vpop.f32.mrf.mxu0
        %824 = vdwg.mxu0
        %v825 = vld [vmem:[#allocation10 + $0x8] sm:$0xff]
        %v827 = vsel %vm495, %v822, 0
        %829 = vmatprep.subr.mxu0 0.0
        %830 = vmatpush1.msra.mxu0 0.0
        %831 = vmatprep.subr.mxu0 0.0
        %832 = vmatpush1.msra.mxu0 0.0
        %833 = vmatprep.subr.mxu0 0.0
        %834 = vmatpush1.msra.mxu0 0.0
        %835 = vmatprep.subr.mxu0 0.0
        %836 = vmatpush1.msra.mxu0 0.0
        %837 = vmatprep.subr.mxu0 0.0
        %838 = vmatpush1.msra.mxu0 0.0
        %839 = vmatprep.subr.mxu0 0.0
        %840 = vmatpush1.msra.mxu0 0.0
        %841 = vmatprep.subr.mxu0 0.0
        %842 = vmatpush1.msra.mxu0 0.0
        %843 = vmatprep.subr.mxu0 0.0
        %844 = vmatpush1.msra.mxu0 0.0
        %845 = vmatprep.subr.mxu0 0.0
        %846 = vmatpush1.msra.mxu0 0.0
        %847 = vmatprep.subr.mxu0 0.0
        %848 = vmatpush1.msra.mxu0 0.0
        %849 = vmatprep.subr.mxu0 0.0
        %850 = vmatpush1.msra.mxu0 0.0
        %851 = vmatprep.subr.mxu0 0.0
        %852 = vmatpush1.msra.mxu0 0.0
        %853 = vmatprep.subr.mxu0 0.0
        %854 = vmatpush1.msra.mxu0 0.0
        %855 = vmatprep.subr.mxu0 0.0
        %856 = vmatpush1.msra.mxu0 0.0
        %857 = vmatprep.subr.mxu0 0.0
        %858 = vmatpush1.msra.mxu0 0.0
        %859 = vmatprep.subr.mxu0 0.0
        %860 = vmatpush1.msra.mxu0 %v825
        %861 = vmatprep.subr.mxu0 0.0
        %862 = vmatpush2.msra.mxu0 0.0
        %863 = vmatprep.subr.mxu0 0.0
        %864 = vmatpush2.msra.mxu0 0.0
        %865 = vmatprep.subr.mxu0 0.0
        %866 = vmatpush2.msra.mxu0 0.0
        %867 = vmatprep.subr.mxu0 0.0
        %868 = vmatpush2.msra.mxu0 0.0
        %869 = vmatprep.subr.mxu0 0.0
        %870 = vmatpush2.msra.mxu0 0.0
        %871 = vmatprep.subr.mxu0 0.0
        %872 = vmatpush2.msra.mxu0 0.0
        %873 = vmatprep.subr.mxu0 0.0
        %874 = vmatpush2.msra.mxu0 0.0
        %875 = vmatprep.subr.mxu0 0.0
        %876 = vmatpush2.msra.mxu0 0.0
        %877 = vmatprep.subr.mxu0 0.0
        %878 = vmatpush2.msra.mxu0 0.0
        %879 = vmatprep.subr.mxu0 0.0
        %880 = vmatpush2.msra.mxu0 0.0
        %881 = vmatprep.subr.mxu0 0.0
        %882 = vmatpush2.msra.mxu0 0.0
        %883 = vmatprep.subr.mxu0 0.0
        %884 = vmatpush2.msra.mxu0 0.0
        %885 = vmatprep.subr.mxu0 0.0
        %886 = vmatpush2.msra.mxu0 0.0
        %887 = vmatprep.subr.mxu0 0.0
        %888 = vmatpush2.msra.mxu0 0.0
        %889 = vmatprep.subr.mxu0 0.0
        %890 = vmatpush2.msra.mxu0 0.0
        %891 = vmatprep.subr.mxu0 0.0
        %892 = vmatpush2.msra.mxu0 0.0
        %893 = vmatprep.mubr.f32.mxu0 0.0
        %894 = vmatmul.mubr.f32.gmra.mxu0 %v827
        %v895 = vpop.f32.mrf.mxu0
        %v896 = vadd.f32 0.0, %v895
        %v897 = vpop.f32.mrf.mxu0
        %898 = vdwg.mxu0
        %v900 = vsel %vm495, %v656, 0
        %902 = vmatprep.subr.mxu0 0.0
        %903 = vmatpush1.msra.mxu0 0.0
        %904 = vmatprep.subr.mxu0 0.0
        %905 = vmatpush1.msra.mxu0 0.0
        %906 = vmatprep.subr.mxu0 0.0
        %907 = vmatpush1.msra.mxu0 0.0
        %908 = vmatprep.subr.mxu0 0.0
        %909 = vmatpush1.msra.mxu0 0.0
        %910 = vmatprep.subr.mxu0 0.0
        %911 = vmatpush1.msra.mxu0 0.0
        %912 = vmatprep.subr.mxu0 0.0
        %913 = vmatpush1.msra.mxu0 0.0
        %914 = vmatprep.subr.mxu0 0.0
        %915 = vmatpush1.msra.mxu0 0.0
        %916 = vmatprep.subr.mxu0 0.0
        %917 = vmatpush1.msra.mxu0 0.0
        %918 = vmatprep.subr.mxu0 0.0
        %919 = vmatpush1.msra.mxu0 0.0
        %920 = vmatprep.subr.mxu0 0.0
        %921 = vmatpush1.msra.mxu0 0.0
        %922 = vmatprep.subr.mxu0 0.0
        %923 = vmatpush1.msra.mxu0 0.0
        %924 = vmatprep.subr.mxu0 0.0
        %925 = vmatpush1.msra.mxu0 0.0
        %926 = vmatprep.subr.mxu0 0.0
        %927 = vmatpush1.msra.mxu0 0.0
        %928 = vmatprep.subr.mxu0 0.0
        %929 = vmatpush1.msra.mxu0 0.0
        %930 = vmatprep.subr.mxu0 0.0
        %931 = vmatpush1.msra.mxu0 0.0
        %932 = vmatprep.subr.mxu0 0.0
        %933 = vmatpush1.msra.mxu0 %v659
        %934 = vmatprep.subr.mxu0 0.0
        %935 = vmatpush2.msra.mxu0 0.0
        %936 = vmatprep.subr.mxu0 0.0
        %937 = vmatpush2.msra.mxu0 0.0
        %938 = vmatprep.subr.mxu0 0.0
        %939 = vmatpush2.msra.mxu0 0.0
        %940 = vmatprep.subr.mxu0 0.0
        %941 = vmatpush2.msra.mxu0 0.0
        %942 = vmatprep.subr.mxu0 0.0
        %943 = vmatpush2.msra.mxu0 0.0
        %944 = vmatprep.subr.mxu0 0.0
        %945 = vmatpush2.msra.mxu0 0.0
        %946 = vmatprep.subr.mxu0 0.0
        %947 = vmatpush2.msra.mxu0 0.0
        %948 = vmatprep.subr.mxu0 0.0
        %949 = vmatpush2.msra.mxu0 0.0
        %950 = vmatprep.subr.mxu0 0.0
        %951 = vmatpush2.msra.mxu0 0.0
        %952 = vmatprep.subr.mxu0 0.0
        %953 = vmatpush2.msra.mxu0 0.0
        %954 = vmatprep.subr.mxu0 0.0
        %955 = vmatpush2.msra.mxu0 0.0
        %956 = vmatprep.subr.mxu0 0.0
        %957 = vmatpush2.msra.mxu0 0.0
        %958 = vmatprep.subr.mxu0 0.0
        %959 = vmatpush2.msra.mxu0 0.0
        %960 = vmatprep.subr.mxu0 0.0
        %961 = vmatpush2.msra.mxu0 0.0
        %962 = vmatprep.subr.mxu0 0.0
        %963 = vmatpush2.msra.mxu0 0.0
        %964 = vmatprep.subr.mxu0 0.0
        %965 = vmatpush2.msra.mxu0 0.0
        %966 = vmatprep.mubr.f32.mxu0 0.0
        %967 = vmatmul.mubr.f32.gmra.mxu0 %v900
        %v968 = vpop.f32.mrf.mxu0
        %v969 = vadd.f32 %v896, %v968
        %v970 = vpop.f32.mrf.mxu0
        %971 = vdwg.mxu0
        %972 = vrot.lane.b32.xlu0 %v415, 112
        %v973 = vpop.permute.xlu0 %972
        %974 = vrot.lane.b32.xlu0 %v492, 112
        %v975 = vpop.permute.xlu0 %974
        %v976 = vsel %vm495, %v973, 0
        %v978 = vsel %vm495, %v975, 0
        %980 = vmatprep.subr.mxu0 0.0
        %981 = vmatpush1.xpose.msra.mxu0 0.0
        %982 = vmatprep.subr.mxu0 0.0
        %983 = vmatpush1.xpose.msra.mxu0 0.0
        %984 = vmatprep.subr.mxu0 0.0
        %985 = vmatpush1.xpose.msra.mxu0 0.0
        %986 = vmatprep.subr.mxu0 0.0
        %987 = vmatpush1.xpose.msra.mxu0 0.0
        %988 = vmatprep.subr.mxu0 0.0
        %989 = vmatpush1.xpose.msra.mxu0 0.0
        %990 = vmatprep.subr.mxu0 0.0
        %991 = vmatpush1.xpose.msra.mxu0 0.0
        %992 = vmatprep.subr.mxu0 0.0
        %993 = vmatpush1.xpose.msra.mxu0 0.0
        %994 = vmatprep.subr.mxu0 0.0
        %995 = vmatpush1.xpose.msra.mxu0 0.0
        %996 = vmatprep.subr.mxu0 0.0
        %997 = vmatpush1.xpose.msra.mxu0 0.0
        %998 = vmatprep.subr.mxu0 0.0
        %999 = vmatpush1.xpose.msra.mxu0 0.0
        %1000 = vmatprep.subr.mxu0 0.0
        %1001 = vmatpush1.xpose.msra.mxu0 0.0
        %1002 = vmatprep.subr.mxu0 0.0
        %1003 = vmatpush1.xpose.msra.mxu0 0.0
        %1004 = vmatprep.subr.mxu0 0.0
        %1005 = vmatpush1.xpose.msra.mxu0 0.0
        %1006 = vmatprep.subr.mxu0 0.0
        %1007 = vmatpush1.xpose.msra.mxu0 0.0
        %1008 = vmatprep.subr.mxu0 0.0
        %1009 = vmatpush1.xpose.msra.mxu0 0.0
        %1010 = vmatprep.subr.mxu0 0.0
        %1011 = vmatpush1.xpose.msra.mxu0 %v978
        %1012 = vmatprep.subr.mxu0 0.0
        %1013 = vmatpush2.xpose.msra.mxu0 0.0
        %1014 = vmatprep.subr.mxu0 0.0
        %1015 = vmatpush2.xpose.msra.mxu0 0.0
        %1016 = vmatprep.subr.mxu0 0.0
        %1017 = vmatpush2.xpose.msra.mxu0 0.0
        %1018 = vmatprep.subr.mxu0 0.0
        %1019 = vmatpush2.xpose.msra.mxu0 0.0
        %1020 = vmatprep.subr.mxu0 0.0
        %1021 = vmatpush2.xpose.msra.mxu0 0.0
        %1022 = vmatprep.subr.mxu0 0.0
        %1023 = vmatpush2.xpose.msra.mxu0 0.0
        %1024 = vmatprep.subr.mxu0 0.0
        %1025 = vmatpush2.xpose.msra.mxu0 0.0
        %1026 = vmatprep.subr.mxu0 0.0
        %1027 = vmatpush2.xpose.msra.mxu0 0.0
        %1028 = vmatprep.subr.mxu0 0.0
        %1029 = vmatpush2.xpose.msra.mxu0 0.0
        %1030 = vmatprep.subr.mxu0 0.0
        %1031 = vmatpush2.xpose.msra.mxu0 0.0
        %1032 = vmatprep.subr.mxu0 0.0
        %1033 = vmatpush2.xpose.msra.mxu0 0.0
        %1034 = vmatprep.subr.mxu0 0.0
        %1035 = vmatpush2.xpose.msra.mxu0 0.0
        %1036 = vmatprep.subr.mxu0 0.0
        %1037 = vmatpush2.xpose.msra.mxu0 0.0
        %1038 = vmatprep.subr.mxu0 0.0
        %1039 = vmatpush2.xpose.msra.mxu0 0.0
        %1040 = vmatprep.subr.mxu0 0.0
        %1041 = vmatpush2.xpose.msra.mxu0 0.0
        %1042 = vmatprep.subr.mxu0 0.0
        %1043 = vmatpush2.xpose.msra.mxu0 0.0
        %1044 = vmatprep.mubr.f32.mxu0 0.0
        %1045 = vmatmul.mubr.f32.gmra.mxu0 %v976
        %v1046 = vpop.f32.mrf.mxu0
        %v1047 = vadd.f32 0.0, %v1046
        %v1048 = vpop.f32.mrf.mxu0
        %1049 = vdwg.mxu0
        %v1050 = vsel %vm495, %v1047, -inf
        %1051 = vmax.xlane.f32.xlu0 %v1050
        %v1052 = vpop.xlane.xlu0 %1051
        %v1053 = vsub.f32 %v1047, %v1052
        %v1054 = vmul.f32 %v1053, 1.442695
        %v1055 = vpow.pop %v1054
        %v1056 = vsel %vm495, %v1055, 0.0
        %1057 = vadd.xlane.f32.xlu0 %v1056
        %v1058 = vpop.xlane.xlu0 %1057
        %v1059 = vrcp.pop %v1058
        %v1060 = vmul.f32 %v1055, %v1059
        %1061 = vrot.lane.b32.xlu0 %v492, 80
        %v1062 = vpop.permute.xlu0 %1061
        %v1065 = vsel %vm495, %v1060, 0
        %1067 = vmatprep.subr.mxu0 0.0
        %1068 = vmatpush1.msra.mxu0 0.0
        %1069 = vmatprep.subr.mxu0 0.0
        %1070 = vmatpush1.msra.mxu0 0.0
        %1071 = vmatprep.subr.mxu0 0.0
        %1072 = vmatpush1.msra.mxu0 0.0
        %1073 = vmatprep.subr.mxu0 0.0
        %1074 = vmatpush1.msra.mxu0 0.0
        %1075 = vmatprep.subr.mxu0 0.0
        %1076 = vmatpush1.msra.mxu0 0.0
        %1077 = vmatprep.subr.mxu0 0.0
        %1078 = vmatpush1.msra.mxu0 0.0
        %1079 = vmatprep.subr.mxu0 0.0
        %1080 = vmatpush1.msra.mxu0 0.0
        %1081 = vmatprep.subr.mxu0 0.0
        %1082 = vmatpush1.msra.mxu0 0.0
        %1083 = vmatprep.subr.mxu0 0.0
        %1084 = vmatpush1.msra.mxu0 0.0
        %1085 = vmatprep.subr.mxu0 0.0
        %1086 = vmatpush1.msra.mxu0 0.0
        %1087 = vmatprep.subr.mxu0 0.0
        %1088 = vmatpush1.msra.mxu0 0.0
        %1089 = vmatprep.subr.mxu0 0.0
        %1090 = vmatpush1.msra.mxu0 0.0
        %1091 = vmatprep.subr.mxu0 0.0
        %1092 = vmatpush1.msra.mxu0 0.0
        %1093 = vmatprep.subr.mxu0 0.0
        %1094 = vmatpush1.msra.mxu0 0.0
        %1095 = vmatprep.subr.mxu0 0.0
        %1096 = vmatpush1.msra.mxu0 0.0
        %1097 = vmatprep.subr.mxu0 0.0
        %1098 = vmatpush1.msra.mxu0 %v1062
        %1099 = vmatprep.subr.mxu0 0.0
        %1100 = vmatpush2.msra.mxu0 0.0
        %1101 = vmatprep.subr.mxu0 0.0
        %1102 = vmatpush2.msra.mxu0 0.0
        %1103 = vmatprep.subr.mxu0 0.0
        %1104 = vmatpush2.msra.mxu0 0.0
        %1105 = vmatprep.subr.mxu0 0.0
        %1106 = vmatpush2.msra.mxu0 0.0
        %1107 = vmatprep.subr.mxu0 0.0
        %1108 = vmatpush2.msra.mxu0 0.0
        %1109 = vmatprep.subr.mxu0 0.0
        %1110 = vmatpush2.msra.mxu0 0.0
        %1111 = vmatprep.subr.mxu0 0.0
        %1112 = vmatpush2.msra.mxu0 0.0
        %1113 = vmatprep.subr.mxu0 0.0
        %1114 = vmatpush2.msra.mxu0 0.0
        %1115 = vmatprep.subr.mxu0 0.0
        %1116 = vmatpush2.msra.mxu0 0.0
        %1117 = vmatprep.subr.mxu0 0.0
        %1118 = vmatpush2.msra.mxu0 0.0
        %1119 = vmatprep.subr.mxu0 0.0
        %1120 = vmatpush2.msra.mxu0 0.0
        %1121 = vmatprep.subr.mxu0 0.0
        %1122 = vmatpush2.msra.mxu0 0.0
        %1123 = vmatprep.subr.mxu0 0.0
        %1124 = vmatpush2.msra.mxu0 0.0
        %1125 = vmatprep.subr.mxu0 0.0
        %1126 = vmatpush2.msra.mxu0 0.0
        %1127 = vmatprep.subr.mxu0 0.0
        %1128 = vmatpush2.msra.mxu0 0.0
        %1129 = vmatprep.subr.mxu0 0.0
        %1130 = vmatpush2.msra.mxu0 0.0
        %1131 = vmatprep.mubr.f32.mxu0 0.0
        %1132 = vmatmul.mubr.f32.gmra.mxu0 %v1065
        %v1133 = vpop.f32.mrf.mxu0
        %v1134 = vadd.f32 0.0, %v1133
        %v1135 = vpop.f32.mrf.mxu0
        %1136 = vdwg.mxu0
        %v1137 = vld [vmem:[#allocation10 + $0x10] sm:$0xff]
        %v1139 = vsel %vm495, %v1134, 0
        %1141 = vmatprep.subr.mxu0 0.0
        %1142 = vmatpush1.msra.mxu0 0.0
        %1143 = vmatprep.subr.mxu0 0.0
        %1144 = vmatpush1.msra.mxu0 0.0
        %1145 = vmatprep.subr.mxu0 0.0
        %1146 = vmatpush1.msra.mxu0 0.0
        %1147 = vmatprep.subr.mxu0 0.0
        %1148 = vmatpush1.msra.mxu0 0.0
        %1149 = vmatprep.subr.mxu0 0.0
        %1150 = vmatpush1.msra.mxu0 0.0
        %1151 = vmatprep.subr.mxu0 0.0
        %1152 = vmatpush1.msra.mxu0 0.0
        %1153 = vmatprep.subr.mxu0 0.0
        %1154 = vmatpush1.msra.mxu0 0.0
        %1155 = vmatprep.subr.mxu0 0.0
        %1156 = vmatpush1.msra.mxu0 0.0
        %1157 = vmatprep.subr.mxu0 0.0
        %1158 = vmatpush1.msra.mxu0 0.0
        %1159 = vmatprep.subr.mxu0 0.0
        %1160 = vmatpush1.msra.mxu0 0.0
        %1161 = vmatprep.subr.mxu0 0.0
        %1162 = vmatpush1.msra.mxu0 0.0
        %1163 = vmatprep.subr.mxu0 0.0
        %1164 = vmatpush1.msra.mxu0 0.0
        %1165 = vmatprep.subr.mxu0 0.0
        %1166 = vmatpush1.msra.mxu0 0.0
        %1167 = vmatprep.subr.mxu0 0.0
        %1168 = vmatpush1.msra.mxu0 0.0
        %1169 = vmatprep.subr.mxu0 0.0
        %1170 = vmatpush1.msra.mxu0 0.0
        %1171 = vmatprep.subr.mxu0 0.0
        %1172 = vmatpush1.msra.mxu0 %v1137
        %1173 = vmatprep.subr.mxu0 0.0
        %1174 = vmatpush2.msra.mxu0 0.0
        %1175 = vmatprep.subr.mxu0 0.0
        %1176 = vmatpush2.msra.mxu0 0.0
        %1177 = vmatprep.subr.mxu0 0.0
        %1178 = vmatpush2.msra.mxu0 0.0
        %1179 = vmatprep.subr.mxu0 0.0
        %1180 = vmatpush2.msra.mxu0 0.0
        %1181 = vmatprep.subr.mxu0 0.0
        %1182 = vmatpush2.msra.mxu0 0.0
        %1183 = vmatprep.subr.mxu0 0.0
        %1184 = vmatpush2.msra.mxu0 0.0
        %1185 = vmatprep.subr.mxu0 0.0
        %1186 = vmatpush2.msra.mxu0 0.0
        %1187 = vmatprep.subr.mxu0 0.0
        %1188 = vmatpush2.msra.mxu0 0.0
        %1189 = vmatprep.subr.mxu0 0.0
        %1190 = vmatpush2.msra.mxu0 0.0
        %1191 = vmatprep.subr.mxu0 0.0
        %1192 = vmatpush2.msra.mxu0 0.0
        %1193 = vmatprep.subr.mxu0 0.0
        %1194 = vmatpush2.msra.mxu0 0.0
        %1195 = vmatprep.subr.mxu0 0.0
        %1196 = vmatpush2.msra.mxu0 0.0
        %1197 = vmatprep.subr.mxu0 0.0
        %1198 = vmatpush2.msra.mxu0 0.0
        %1199 = vmatprep.subr.mxu0 0.0
        %1200 = vmatpush2.msra.mxu0 0.0
        %1201 = vmatprep.subr.mxu0 0.0
        %1202 = vmatpush2.msra.mxu0 0.0
        %1203 = vmatprep.subr.mxu0 0.0
        %1204 = vmatpush2.msra.mxu0 0.0
        %1205 = vmatprep.mubr.f32.mxu0 0.0
        %1206 = vmatmul.mubr.f32.gmra.mxu0 %v1139
        %v1207 = vpop.f32.mrf.mxu0
        %v1208 = vadd.f32 0.0, %v1207
        %v1209 = vpop.f32.mrf.mxu0
        %1210 = vdwg.mxu0
        %v1211 = vadd.f32 %v969, %v1208
        %1212 = vrot.lane.b32.xlu0 %v415, 104
        %v1213 = vpop.permute.xlu0 %1212
        %1214 = vrot.lane.b32.xlu0 %v492, 104
        %v1215 = vpop.permute.xlu0 %1214
        %v1216 = vsel %vm495, %v1213, 0
        %v1218 = vsel %vm495, %v1215, 0
        %1220 = vmatprep.subr.mxu0 0.0
        %1221 = vmatpush1.xpose.msra.mxu0 0.0
        %1222 = vmatprep.subr.mxu0 0.0
        %1223 = vmatpush1.xpose.msra.mxu0 0.0
        %1224 = vmatprep.subr.mxu0 0.0
        %1225 = vmatpush1.xpose.msra.mxu0 0.0
        %1226 = vmatprep.subr.mxu0 0.0
        %1227 = vmatpush1.xpose.msra.mxu0 0.0
        %1228 = vmatprep.subr.mxu0 0.0
        %1229 = vmatpush1.xpose.msra.mxu0 0.0
        %1230 = vmatprep.subr.mxu0 0.0
        %1231 = vmatpush1.xpose.msra.mxu0 0.0
        %1232 = vmatprep.subr.mxu0 0.0
        %1233 = vmatpush1.xpose.msra.mxu0 0.0
        %1234 = vmatprep.subr.mxu0 0.0
        %1235 = vmatpush1.xpose.msra.mxu0 0.0
        %1236 = vmatprep.subr.mxu0 0.0
        %1237 = vmatpush1.xpose.msra.mxu0 0.0
        %1238 = vmatprep.subr.mxu0 0.0
        %1239 = vmatpush1.xpose.msra.mxu0 0.0
        %1240 = vmatprep.subr.mxu0 0.0
        %1241 = vmatpush1.xpose.msra.mxu0 0.0
        %1242 = vmatprep.subr.mxu0 0.0
        %1243 = vmatpush1.xpose.msra.mxu0 0.0
        %1244 = vmatprep.subr.mxu0 0.0
        %1245 = vmatpush1.xpose.msra.mxu0 0.0
        %1246 = vmatprep.subr.mxu0 0.0
        %1247 = vmatpush1.xpose.msra.mxu0 0.0
        %1248 = vmatprep.subr.mxu0 0.0
        %1249 = vmatpush1.xpose.msra.mxu0 0.0
        %1250 = vmatprep.subr.mxu0 0.0
        %1251 = vmatpush1.xpose.msra.mxu0 %v1218
        %1252 = vmatprep.subr.mxu0 0.0
        %1253 = vmatpush2.xpose.msra.mxu0 0.0
        %1254 = vmatprep.subr.mxu0 0.0
        %1255 = vmatpush2.xpose.msra.mxu0 0.0
        %1256 = vmatprep.subr.mxu0 0.0
        %1257 = vmatpush2.xpose.msra.mxu0 0.0
        %1258 = vmatprep.subr.mxu0 0.0
        %1259 = vmatpush2.xpose.msra.mxu0 0.0
        %1260 = vmatprep.subr.mxu0 0.0
        %1261 = vmatpush2.xpose.msra.mxu0 0.0
        %1262 = vmatprep.subr.mxu0 0.0
        %1263 = vmatpush2.xpose.msra.mxu0 0.0
        %1264 = vmatprep.subr.mxu0 0.0
        %1265 = vmatpush2.xpose.msra.mxu0 0.0
        %1266 = vmatprep.subr.mxu0 0.0
        %1267 = vmatpush2.xpose.msra.mxu0 0.0
        %1268 = vmatprep.subr.mxu0 0.0
        %1269 = vmatpush2.xpose.msra.mxu0 0.0
        %1270 = vmatprep.subr.mxu0 0.0
        %1271 = vmatpush2.xpose.msra.mxu0 0.0
        %1272 = vmatprep.subr.mxu0 0.0
        %1273 = vmatpush2.xpose.msra.mxu0 0.0
        %1274 = vmatprep.subr.mxu0 0.0
        %1275 = vmatpush2.xpose.msra.mxu0 0.0
        %1276 = vmatprep.subr.mxu0 0.0
        %1277 = vmatpush2.xpose.msra.mxu0 0.0
        %1278 = vmatprep.subr.mxu0 0.0
        %1279 = vmatpush2.xpose.msra.mxu0 0.0
        %1280 = vmatprep.subr.mxu0 0.0
        %1281 = vmatpush2.xpose.msra.mxu0 0.0
        %1282 = vmatprep.subr.mxu0 0.0
        %1283 = vmatpush2.xpose.msra.mxu0 0.0
        %1284 = vmatprep.mubr.f32.mxu0 0.0
        %1285 = vmatmul.mubr.f32.gmra.mxu0 %v1216
        %v1286 = vpop.f32.mrf.mxu0
        %v1287 = vadd.f32 0.0, %v1286
        %v1288 = vpop.f32.mrf.mxu0
        %1289 = vdwg.mxu0
        %v1290 = vsel %vm495, %v1287, -inf
        %1291 = vmax.xlane.f32.xlu0 %v1290
        %v1292 = vpop.xlane.xlu0 %1291
        %v1293 = vsub.f32 %v1287, %v1292
        %v1294 = vmul.f32 %v1293, 1.442695
        %v1295 = vpow.pop %v1294
        %v1296 = vsel %vm495, %v1295, 0.0
        %1297 = vadd.xlane.f32.xlu0 %v1296
        %v1298 = vpop.xlane.xlu0 %1297
        %v1299 = vrcp.pop %v1298
        %v1300 = vmul.f32 %v1295, %v1299
        %1301 = vrot.lane.b32.xlu0 %v492, 72
        %v1302 = vpop.permute.xlu0 %1301
        %v1305 = vsel %vm495, %v1300, 0
        %1307 = vmatprep.subr.mxu0 0.0
        %1308 = vmatpush1.msra.mxu0 0.0
        %1309 = vmatprep.subr.mxu0 0.0
        %1310 = vmatpush1.msra.mxu0 0.0
        %1311 = vmatprep.subr.mxu0 0.0
        %1312 = vmatpush1.msra.mxu0 0.0
        %1313 = vmatprep.subr.mxu0 0.0
        %1314 = vmatpush1.msra.mxu0 0.0
        %1315 = vmatprep.subr.mxu0 0.0
        %1316 = vmatpush1.msra.mxu0 0.0
        %1317 = vmatprep.subr.mxu0 0.0
        %1318 = vmatpush1.msra.mxu0 0.0
        %1319 = vmatprep.subr.mxu0 0.0
        %1320 = vmatpush1.msra.mxu0 0.0
        %1321 = vmatprep.subr.mxu0 0.0
        %1322 = vmatpush1.msra.mxu0 0.0
        %1323 = vmatprep.subr.mxu0 0.0
        %1324 = vmatpush1.msra.mxu0 0.0
        %1325 = vmatprep.subr.mxu0 0.0
        %1326 = vmatpush1.msra.mxu0 0.0
        %1327 = vmatprep.subr.mxu0 0.0
        %1328 = vmatpush1.msra.mxu0 0.0
        %1329 = vmatprep.subr.mxu0 0.0
        %1330 = vmatpush1.msra.mxu0 0.0
        %1331 = vmatprep.subr.mxu0 0.0
        %1332 = vmatpush1.msra.mxu0 0.0
        %1333 = vmatprep.subr.mxu0 0.0
        %1334 = vmatpush1.msra.mxu0 0.0
        %1335 = vmatprep.subr.mxu0 0.0
        %1336 = vmatpush1.msra.mxu0 0.0
        %1337 = vmatprep.subr.mxu0 0.0
        %1338 = vmatpush1.msra.mxu0 %v1302
        %1339 = vmatprep.subr.mxu0 0.0
        %1340 = vmatpush2.msra.mxu0 0.0
        %1341 = vmatprep.subr.mxu0 0.0
        %1342 = vmatpush2.msra.mxu0 0.0
        %1343 = vmatprep.subr.mxu0 0.0
        %1344 = vmatpush2.msra.mxu0 0.0
        %1345 = vmatprep.subr.mxu0 0.0
        %1346 = vmatpush2.msra.mxu0 0.0
        %1347 = vmatprep.subr.mxu0 0.0
        %1348 = vmatpush2.msra.mxu0 0.0
        %1349 = vmatprep.subr.mxu0 0.0
        %1350 = vmatpush2.msra.mxu0 0.0
        %1351 = vmatprep.subr.mxu0 0.0
        %1352 = vmatpush2.msra.mxu0 0.0
        %1353 = vmatprep.subr.mxu0 0.0
        %1354 = vmatpush2.msra.mxu0 0.0
        %1355 = vmatprep.subr.mxu0 0.0
        %1356 = vmatpush2.msra.mxu0 0.0
        %1357 = vmatprep.subr.mxu0 0.0
        %1358 = vmatpush2.msra.mxu0 0.0
        %1359 = vmatprep.subr.mxu0 0.0
        %1360 = vmatpush2.msra.mxu0 0.0
        %1361 = vmatprep.subr.mxu0 0.0
        %1362 = vmatpush2.msra.mxu0 0.0
        %1363 = vmatprep.subr.mxu0 0.0
        %1364 = vmatpush2.msra.mxu0 0.0
        %1365 = vmatprep.subr.mxu0 0.0
        %1366 = vmatpush2.msra.mxu0 0.0
        %1367 = vmatprep.subr.mxu0 0.0
        %1368 = vmatpush2.msra.mxu0 0.0
        %1369 = vmatprep.subr.mxu0 0.0
        %1370 = vmatpush2.msra.mxu0 0.0
        %1371 = vmatprep.mubr.f32.mxu0 0.0
        %1372 = vmatmul.mubr.f32.gmra.mxu0 %v1305
        %v1373 = vpop.f32.mrf.mxu0
        %v1374 = vadd.f32 0.0, %v1373
        %v1375 = vpop.f32.mrf.mxu0
        %1376 = vdwg.mxu0
        %v1377 = vld [vmem:[#allocation10 + $0x18] sm:$0xff]
        %v1379 = vsel %vm495, %v1374, 0
        %1381 = vmatprep.subr.mxu0 0.0
        %1382 = vmatpush1.msra.mxu0 0.0
        %1383 = vmatprep.subr.mxu0 0.0
        %1384 = vmatpush1.msra.mxu0 0.0
        %1385 = vmatprep.subr.mxu0 0.0
        %1386 = vmatpush1.msra.mxu0 0.0
        %1387 = vmatprep.subr.mxu0 0.0
        %1388 = vmatpush1.msra.mxu0 0.0
        %1389 = vmatprep.subr.mxu0 0.0
        %1390 = vmatpush1.msra.mxu0 0.0
        %1391 = vmatprep.subr.mxu0 0.0
        %1392 = vmatpush1.msra.mxu0 0.0
        %1393 = vmatprep.subr.mxu0 0.0
        %1394 = vmatpush1.msra.mxu0 0.0
        %1395 = vmatprep.subr.mxu0 0.0
        %1396 = vmatpush1.msra.mxu0 0.0
        %1397 = vmatprep.subr.mxu0 0.0
        %1398 = vmatpush1.msra.mxu0 0.0
        %1399 = vmatprep.subr.mxu0 0.0
        %1400 = vmatpush1.msra.mxu0 0.0
        %1401 = vmatprep.subr.mxu0 0.0
        %1402 = vmatpush1.msra.mxu0 0.0
        %1403 = vmatprep.subr.mxu0 0.0
        %1404 = vmatpush1.msra.mxu0 0.0
        %1405 = vmatprep.subr.mxu0 0.0
        %1406 = vmatpush1.msra.mxu0 0.0
        %1407 = vmatprep.subr.mxu0 0.0
        %1408 = vmatpush1.msra.mxu0 0.0
        %1409 = vmatprep.subr.mxu0 0.0
        %1410 = vmatpush1.msra.mxu0 0.0
        %1411 = vmatprep.subr.mxu0 0.0
        %1412 = vmatpush1.msra.mxu0 %v1377
        %1413 = vmatprep.subr.mxu0 0.0
        %1414 = vmatpush2.msra.mxu0 0.0
        %1415 = vmatprep.subr.mxu0 0.0
        %1416 = vmatpush2.msra.mxu0 0.0
        %1417 = vmatprep.subr.mxu0 0.0
        %1418 = vmatpush2.msra.mxu0 0.0
        %1419 = vmatprep.subr.mxu0 0.0
        %1420 = vmatpush2.msra.mxu0 0.0
        %1421 = vmatprep.subr.mxu0 0.0
        %1422 = vmatpush2.msra.mxu0 0.0
        %1423 = vmatprep.subr.mxu0 0.0
        %1424 = vmatpush2.msra.mxu0 0.0
        %1425 = vmatprep.subr.mxu0 0.0
        %1426 = vmatpush2.msra.mxu0 0.0
        %1427 = vmatprep.subr.mxu0 0.0
        %1428 = vmatpush2.msra.mxu0 0.0
        %1429 = vmatprep.subr.mxu0 0.0
        %1430 = vmatpush2.msra.mxu0 0.0
        %1431 = vmatprep.subr.mxu0 0.0
        %1432 = vmatpush2.msra.mxu0 0.0
        %1433 = vmatprep.subr.mxu0 0.0
        %1434 = vmatpush2.msra.mxu0 0.0
        %1435 = vmatprep.subr.mxu0 0.0
        %1436 = vmatpush2.msra.mxu0 0.0
        %1437 = vmatprep.subr.mxu0 0.0
        %1438 = vmatpush2.msra.mxu0 0.0
        %1439 = vmatprep.subr.mxu0 0.0
        %1440 = vmatpush2.msra.mxu0 0.0
        %1441 = vmatprep.subr.mxu0 0.0
        %1442 = vmatpush2.msra.mxu0 0.0
        %1443 = vmatprep.subr.mxu0 0.0
        %1444 = vmatpush2.msra.mxu0 0.0
        %1445 = vmatprep.mubr.f32.mxu0 0.0
        %1446 = vmatmul.mubr.f32.gmra.mxu0 %v1379
        %v1447 = vpop.f32.mrf.mxu0
        %v1448 = vadd.f32 0.0, %v1447
        %v1449 = vpop.f32.mrf.mxu0
        %1450 = vdwg.mxu0
        %v1451 = vadd.f32 %v1211, %v1448
        %1452 = vst.msk [vmem:[%s337] sm:$0xff] %vm344, %v1451
        %s1453 = sand.u32 %s165, 1
        %s1454 = scalar_lea.sflag [#allocation4], %s1453
        %s1455 = sand.u32 %s165, 1
        %s1456 = smul.addr %s1455, 8
        %s1457 = scalar_lea.vmem [#allocation11], %s1456
        // Predicated region
        $region61: #{tpu_custom_call.1} parent=39 // pred_check
          %p1458 = pneg %p175
        $region62: #{tpu_custom_call.1} parent=39 // pred_check_branch
          %1460 = sbr.rel (%p1458) target = $region64
        $region63: #{tpu_custom_call.1} parent=39 // pred_region
          %s1462 = ssub.s32 128, 128
          %1463 = vsyncadd %s1454, %s1462
          %s1464 = smul.addr %s30, 2
          %s1465 = sadd.s32 %s31, %s1464
          %s1466 = smul.addr %s1465, 128
          %s1467 = scalar_lea.hbm %s5, %s1466
          %s1469 = sshll.u32 %s1457, 4
          %s1470 = int_to_ptr.vmem [resolvable:$true] %s1469
          %1472 = dma.vmem_to_hbm [thread:$0]  %s1470, 128, %s1467, %s1454
        $region64: #{tpu_custom_call.1} parent=39 // pred_fallthru
          _
      $region40: #{tpu_custom_call.1} parent=5 // pred_fallthru
        _
      %p1473 = scmp.le.s32.totalorder 2, %s21
      // Predicated region
      $region65: #{tpu_custom_call.1} parent=5 // pred_check
        %p1474 = pneg %p1473
      $region66: #{tpu_custom_call.1} parent=5 // pred_check_branch
        %1476 = sbr.rel (%p1474) target = $region68
      $region67: #{tpu_custom_call.1} parent=5 // pred_region
        %s1477 = ssub.s32 %s21, 2
        // Predicated region
        $region69: #{tpu_custom_call.1} parent=67 // pred_check
          %p1478 = pneg %p181
        $region70: #{tpu_custom_call.1} parent=67 // pred_check_branch
          %1480 = sbr.rel (%p1478) target = $region72
        $region71: #{tpu_custom_call.1} parent=67 // pred_region
          %s1481 = sand.u32 %s166, 1
          %s1482 = scalar_lea.sflag [#allocation4], %s1481
          %s1483 = sand.u32 %s166, 1
          %s1484 = smul.addr %s1483, 8
          %s1485 = scalar_lea.vmem [#allocation11], %s1484
          %1486 = dma.done %s1482, 128
        $region72: #{tpu_custom_call.1} parent=67 // pred_fallthru
          _
      $region68: #{tpu_custom_call.1} parent=5 // pred_fallthru
        _
    $region6: #{tpu_custom_call.1} parent=1 // loop_footer
      %s25 = sadd.s32 1, %s21
    $region7: #{tpu_custom_call.1} parent=1 // loop_footer_branch
      %20 = sbr.rel target = $region3
    $region8: #{tpu_custom_call.1} parent=1 // loop_exit
      _
    %1487 = vsyncpa [#allocation3], 1
    %s1488 = scalar_lea.sflag [#allocation3], 1
    %1489 = vsyncpa %s1488, 1
    %1490 = vsyncpa [#allocation6], 1
    %s1491 = scalar_lea.sflag [#allocation6], 1
    %1492 = vsyncpa %s1491, 1
    %1493 = vsyncpa [#allocation9], 1
    %1494 = vsyncpa [#allocation4], 1
    %s1495 = scalar_lea.sflag [#allocation4], 1
    %1496 = vsyncpa %s1495, 1

</llo_original>
